<compile_context>
chip_gen: v6e
topology: v6e:2x2x1
jax: 0.10.0
libtpu: 0.0.40
codegen_flags: <defaults>
</compile_context>

<pallas_src>
import functools

import jax
import jax.numpy as jnp
from jax import lax
from jax.experimental import pallas as pl
from jax.experimental.pallas import tpu as pltpu

KSIZE = 5          # depthwise kernel size [1, 5]
PAD = (KSIZE - 1) // 2
BN_EPS = 1e-5


# ----------------------------- Pallas kernel -------------------------------

def qinvres_kernel(x_ref, w1_ref, b1_ref, wd_ref, bd_ref, w3_ref, b3_ref,
                   o_ref, *, use_res, img_w, cast_mm):
    """One (batch, spatial-block) step: x_ref is (Cin, TL); o_ref is (Cout, TL)."""
    x = x_ref[...]                                      # (Cin, TL) f32
    TL = x.shape[-1]

    def mm_in(a, w_ref):
        # Only cast matmul operands when bf16 was explicitly requested.
        return a.astype(w_ref.dtype) if cast_mm else a

    # --- expand 1x1 conv (+ folded BN) + ReLU  (MXU, f32 accumulation) ------
    y1 = jnp.dot(w1_ref[...], mm_in(x, w1_ref),
                 preferred_element_type=jnp.float32)    # (hidden, TL)
    y1 = jnp.maximum(y1 + b1_ref[...], 0.0)

    # --- depthwise [1,5] conv along W, pad=2, stride=1 (+ folded BN) + ReLU --
    # Shifted taps are lane rolls (XLU); zero padding at each image-row
    # boundary is applied via masks computed in-kernel from one iota (no HBM
    # mask input, no jnp.pad, no materialized shifted-slice copies).
    wd = wd_ref[...]                                    # (hidden, KSIZE)
    bd = bd_ref[...]                                    # (hidden, 1)

    lane = lax.broadcasted_iota(jnp.int32, (1, TL), 1)  # (1, TL)
    if (img_w & (img_w - 1)) == 0:
        col = lane & (img_w - 1)                        # column within image row
    else:
        col = lane % img_w

    def tap(k):
        off = k - PAD
        if off == 0:
            return y1                                   # center tap: no roll/mask
        t = pltpu.roll(y1, shift=(-off) % TL, axis=1)   # t[:, i] = y1[:, i+off]
        valid = ((col + off >= 0) & (col + off < img_w)).astype(jnp.float32)
        return t * valid                                # zero outside the row

    # init accumulator from tap 0 with the BN bias folded in (no zeros pass).
    acc = tap(0) * wd[:, 0:1] + bd
    for k in range(1, KSIZE):                           # static unrolled taps
        acc = acc + tap(k) * wd[:, k:k + 1]
    y2 = jnp.maximum(acc, 0.0)                          # (hidden, TL) f32

    # --- project 1x1 conv (+ folded BN), no ReLU  (MXU) ----------------------
    y3 = jnp.dot(w3_ref[...], mm_in(y2, w3_ref),
                 preferred_element_type=jnp.float32)    # (Cout, TL)
    y3 = y3 + b3_ref[...]

    if use_res:
        o_ref[...] = x + y3                             # residual add in f32
    else:
        o_ref[...] = y3


# ------------------------------ JAX wrapper ---------------------------------

def _vmem_budget_bytes():
    """Per-generation VMEM budget with headroom (v7x: 64 MiB physical)."""
    cap = None
    try:
        info = pltpu.get_tpu_info()
        cap = getattr(info, "vmem_capacity_bytes", None)
    except Exception:
        cap = None
    if not cap or cap <= 0:
        cap = 64 * 1024 * 1024          # conservative fallback = v7x physical
    return int(cap * 0.70)              # headroom for compiler scratch/spills


def _estimate_step_bytes(TL, c_in, c_out, hidden):
    """Rough per-grid-step VMEM live set: double-buffered x/out blocks plus
    f32 intermediates (y1, rolled tap, masked tap, acc, y2, y3, iota/col)."""
    return 4 * TL * (2 * c_in + 2 * c_out + 6 * hidden + c_out + 8)


def _pick_rows_per_block(N, H, W, c_in, c_out, hidden, budget_bytes):
    """Largest rows-per-block whose tile is lane-dense, fits the VMEM budget,
    and (when possible) keeps >= 2 total parallel grid steps for v7x's 2 TCs."""
    cands = [d for d in range(1, H + 1)
             if H % d == 0 and ((d * W) % 128 == 0 or d == H)]
    fitting = [d for d in cands
               if _estimate_step_bytes(d * W, c_in, c_out, hidden) <= budget_bytes]
    if not fitting:
        fitting = [min(cands, key=lambda d: _estimate_step_bytes(
            d * W, c_in, c_out, hidden))]
    for d in sorted(fitting, reverse=True):
        if N * (H // d) >= 2:
            return d
    return max(fitting)


def qinverted_residual(x_nchw, folded_params, *, use_res=True,
                       rows_per_block=None, mm_dtype=jnp.float32):
    """x_nchw: (N, Cin, H, W) float32. Returns (N, Cout, H, W) float32."""
    w1, b1, wd, bd, w3, b3 = folded_params
    N, c_in, H, W = x_nchw.shape
    hidden = w1.shape[0]
    c_out = w3.shape[0]

    if use_res and c_in != c_out:
        raise ValueError("use_res=True requires n_in == n_out (and stride == 1)")

    budget = _vmem_budget_bytes()
    if rows_per_block is None:
        rows_per_block = _pick_rows_per_block(N, H, W, c_in, c_out, hidden, budget)
    if H % rows_per_block != 0:
        raise ValueError("rows_per_block must divide H")
    L = H * W
    TL = rows_per_block * W                 # flattened spatial tile (lane axis)
    if TL % 128 != 0 and TL != L:
        raise ValueError("spatial tile should be lane-dense (multiple of 128)")

    # Free reshape of adjacent row-major dims: no transpose, no HBM copy.
    x_flat = x_nchw.reshape(N, c_in, L)

    cast_mm = (mm_dtype != jnp.float32)
    # Pre-cast the 1x1 weights once in the wrapper (kernel never casts weights).
    w1_mm = w1.astype(mm_dtype) if cast_mm else w1
    w3_mm = w3.astype(mm_dtype) if cast_mm else w3

    kernel = functools.partial(qinvres_kernel, use_res=use_res, img_w=W,
                               cast_mm=cast_mm)

    def const_spec(a):
        # Constant index_map => fetched once.  Footprint is a few hundred
        # bytes, so default double-buffering is irrelevant here.
        return pl.BlockSpec(a.shape, lambda n, l: (0, 0))

    flops = 2 * N * L * (c_in * hidden + hidden * c_out + hidden * KSIZE)
    bytes_accessed = 4 * (N * c_in * L + N * c_out * L) + 4 * (
        w1.size + b1.size + wd.size + bd.size + w3.size + b3.size)

    out_flat = pl.pallas_call(
        kernel,
        out_shape=jax.ShapeDtypeStruct((N, c_out, L), jnp.float32),
        grid=(N, L // TL),
        in_specs=[
            pl.BlockSpec((None, c_in, TL), lambda n, l: (n, 0, l)),
            const_spec(w1_mm), const_spec(b1), const_spec(wd), const_spec(bd),
            const_spec(w3_mm), const_spec(b3),
        ],
        out_specs=pl.BlockSpec((None, c_out, TL), lambda n, l: (n, 0, l)),
        compiler_params=pltpu.CompilerParams(
            dimension_semantics=("parallel", "parallel"),
            vmem_limit_bytes=budget,
        ),
        cost_estimate=pl.CostEstimate(flops=flops, transcendentals=0,
                                      bytes_accessed=bytes_accessed),
    )(x_flat, w1_mm, b1, wd, bd, w3_mm, b3)

    return out_flat.reshape(N, c_out, H, W)


# ------------------- parameter init + BN folding (glue) ---------------------

def init_raw_params(key, c_in, c_out, expand_ratio):
    hidden = int(round(c_in * expand_ratio))
    ks = jax.random.split(key, 6)

    def bn_params(k, c):
        k0, k1, k2, k3 = jax.random.split(k, 4)
        gamma = jax.random.uniform(k0, (c,), jnp.float32, 0.5, 1.5)
        beta = 0.1 * jax.random.normal(k1, (c,), jnp.float32)
        mean = 0.1 * jax.random.normal(k2, (c,), jnp.float32)
        var = jax.random.uniform(k3, (c,), jnp.float32, 0.5, 1.5)
        return gamma, beta, mean, var

    p = {
        "w_exp": 0.2 * jax.random.normal(ks[0], (hidden, c_in), jnp.float32),
        "bn_exp": bn_params(ks[1], hidden),
        "w_dw": 0.2 * jax.random.normal(ks[2], (hidden, KSIZE), jnp.float32),
        "bn_dw": bn_params(ks[3], hidden),
        "w_proj": 0.2 * jax.random.normal(ks[4], (c_out, hidden), jnp.float32),
        "bn_proj": bn_params(ks[5], c_out),
    }
    return p, hidden


def fold_params(p):
    """Fold eval-mode BatchNorm into the preceding (bias-free) conv weights."""
    def fold(w, bn):
        gamma, beta, mean, var = bn
        s = gamma / jnp.sqrt(var + BN_EPS)
        return w * s[:, None], beta - mean * s

    w1, b1 = fold(p["w_exp"], p["bn_exp"])       # (hidden, Cin), (hidden,)
    wd, bd = fold(p["w_dw"], p["bn_dw"])         # (hidden, K),   (hidden,)
    w3, b3 = fold(p["w_proj"], p["bn_proj"])     # (Cout, hidden), (Cout,)
    return (w1, b1[:, None], wd, bd[:, None], w3, b3[:, None])


# --------------------------- pure-JAX reference ------------------------------

def reference_nchw(x, p, *, use_res=True):
    """Direct NCHW emulation of the PyTorch module (unfolded BN, f32)."""
    def bn(y, params):
        gamma, beta, mean, var = params
        inv = gamma / jnp.sqrt(var + BN_EPS)
        return (y - mean[None, :, None, None]) * inv[None, :, None, None] \
            + beta[None, :, None, None]

    W = x.shape[-1]
    # expand 1x1 conv + BN + ReLU
    y = jnp.einsum("nchw,oc->nohw", x, p["w_exp"])
    y = jnp.maximum(bn(y, p["bn_exp"]), 0.0)
    # depthwise [1,5] conv + BN + ReLU
    yp = jnp.pad(y, ((0, 0), (0, 0), (0, 0), (PAD, PAD)))
    acc = sum(yp[:, :, :, k:k + W] * p["w_dw"][:, k][None, :, None, None]
              for k in range(KSIZE))
    y = jnp.maximum(bn(acc, p["bn_dw"]), 0.0)
    # project 1x1 conv + BN
    y = jnp.einsum("nchw,oc->nohw", y, p["w_proj"])
    y = bn(y, p["bn_proj"])
    return x + y if use_res else y


# ----------------------------------- main ------------------------------------

if __name__ == "__main__":
    key = jax.random.PRNGKey(0)
    k_x, k_p = jax.random.split(key)

    N, C_IN, H, W = 2, 4, 8, 128
    C_OUT, STRIDE, EXPAND = 4, 1, 2          # use_res: stride==1 and n_in==n_out

    x = jax.random.normal(k_x, (N, C_IN, H, W), jnp.float32)

    raw_params, _hidden = init_raw_params(k_p, C_IN, C_OUT, EXPAND)
    folded = fold_params(raw_params)

    use_res = (STRIDE == 1 and C_IN == C_OUT)
    ref = reference_nchw(x, raw_params, use_res=use_res)

    # Default path: f32 MXU operands (recommended at these tiny channel
    # counts), auto-selected largest VMEM-fitting tile: near-exact check.
    out_f32 = qinverted_residual(x, folded, use_res=use_res)
    out_f32 = jax.block_until_ready(out_f32)
    err_f32 = float(jnp.max(jnp.abs(out_f32 - ref)))
    if err_f32 > 1e-3:
        raise AssertionError(f"f32 Pallas kernel mismatch: max|err|={err_f32}")

    # Optional bf16 matmul-operand path (weights pre-cast in the wrapper);
    # depthwise / bias / ReLU / residual stay f32.
    out_bf16 = qinverted_residual(x, folded, use_res=use_res,
                                  mm_dtype=jnp.bfloat16)
    out_bf16 = jax.block_until_ready(out_bf16)
    err_bf16 = float(jnp.max(jnp.abs(out_bf16 - ref)))
    if err_bf16 > 5e-2:
        raise AssertionError(f"bf16 Pallas kernel mismatch: max|err|={err_bf16}")

    print("KERNEL_OK")
</pallas_src>

<mosaic_0001>
module attributes {stable_mosaic.version = 11 : i64} {
  func.func @qinvres_kernel(%arg0: i32, %arg1: i32, %arg2: memref<1x4x1024xf32, #tpu.memory_space<vmem>>, %arg3: memref<8x4xf32, #tpu.memory_space<vmem>>, %arg4: memref<8x1xf32, #tpu.memory_space<vmem>>, %arg5: memref<8x5xf32, #tpu.memory_space<vmem>>, %arg6: memref<8x1xf32, #tpu.memory_space<vmem>>, %arg7: memref<4x8xf32, #tpu.memory_space<vmem>>, %arg8: memref<4x1xf32, #tpu.memory_space<vmem>>, %arg9: memref<1x4x1024xf32, #tpu.memory_space<vmem>>) attributes {dimension_semantics = [#tpu.dimension_semantics<parallel>, #tpu.dimension_semantics<parallel>], iteration_bounds = array<i64: 2, 1>, scalar_prefetch = 0 : i64, scratch_operands = 0 : i64, tpu.core_type = #tpu.core_type<tc>, window_params = [{transform_indices = @transform_0, window_bounds = array<i64: 1, 4, 1024>}, {pipeline_mode = #tpu.pipeline_mode<synchronous>, transform_indices = @transform_1, window_bounds = array<i64: 8, 4>}, {pipeline_mode = #tpu.pipeline_mode<synchronous>, transform_indices = @transform_2, window_bounds = array<i64: 8, 1>}, {pipeline_mode = #tpu.pipeline_mode<synchronous>, transform_indices = @transform_3, window_bounds = array<i64: 8, 5>}, {pipeline_mode = #tpu.pipeline_mode<synchronous>, transform_indices = @transform_4, window_bounds = array<i64: 8, 1>}, {pipeline_mode = #tpu.pipeline_mode<synchronous>, transform_indices = @transform_5, window_bounds = array<i64: 4, 8>}, {pipeline_mode = #tpu.pipeline_mode<synchronous>, transform_indices = @transform_6, window_bounds = array<i64: 4, 1>}, {transform_indices = @transform_7, window_bounds = array<i64: 1, 4, 1024>}]} {
    %c0 = arith.constant 0 : index
    %c0_0 = arith.constant 0 : index
    %c0_1 = arith.constant 0 : index
    %0 = vector.load %arg2[%c0, %c0_0, %c0_1] : memref<1x4x1024xf32, #tpu.memory_space<vmem>>, vector<1x4x1024xf32>
    %1 = vector.shape_cast %0 : vector<1x4x1024xf32> to vector<4x1024xf32>
    %c0_2 = arith.constant 0 : index
    %c0_3 = arith.constant 0 : index
    %2 = vector.load %arg3[%c0_2, %c0_3] : memref<8x4xf32, #tpu.memory_space<vmem>>, vector<8x4xf32>
    %cst = arith.constant dense<0.000000e+00> : vector<8x1024xf32>
    %3 = tpu.matmul %2, %1, %cst {dimension_numbers = #tpu.dot_dimension_numbers<[1], [0], [0], [1], [0, 0, 1, 1], [], []>} : vector<8x4xf32>, vector<4x1024xf32>, vector<8x1024xf32> -> vector<8x1024xf32>
    %c0_4 = arith.constant 0 : index
    %c0_5 = arith.constant 0 : index
    %4 = vector.load %arg4[%c0_4, %c0_5] : memref<8x1xf32, #tpu.memory_space<vmem>>, vector<8x1xf32>
    %5 = vector.broadcast %4 : vector<8x1xf32> to vector<8x1024xf32>
    %6 = arith.addf %3, %5 : vector<8x1024xf32>
    %cst_6 = arith.constant 0.000000e+00 : f32
    %7 = vector.broadcast %cst_6 : f32 to vector<8x1024xf32>
    %8 = arith.maximumf %6, %7 : vector<8x1024xf32>
    %c0_7 = arith.constant 0 : index
    %c0_8 = arith.constant 0 : index
    %9 = vector.load %arg5[%c0_7, %c0_8] : memref<8x5xf32, #tpu.memory_space<vmem>>, vector<8x5xf32>
    %c0_9 = arith.constant 0 : index
    %c0_10 = arith.constant 0 : index
    %10 = vector.load %arg6[%c0_9, %c0_10] : memref<8x1xf32, #tpu.memory_space<vmem>>, vector<8x1xf32>
    %11 = tpu.iota {dimensions = array<i32: 1>} : vector<1x1024xi32>
    %c127_i32 = arith.constant 127 : i32
    %12 = vector.broadcast %c127_i32 : i32 to vector<1x1024xi32>
    %13 = arith.andi %11, %12 : vector<1x1024xi32>
    %c2_i32 = arith.constant 2 : i32
    %14 = tpu.dynamic_rotate %8 by %c2_i32 dim 1 : vector<8x1024xf32>, i32 -> vector<8x1024xf32>
    %c-2_i32 = arith.constant -2 : i32
    %15 = vector.broadcast %c-2_i32 : i32 to vector<1x1024xi32>
    %16 = arith.addi %13, %15 : vector<1x1024xi32>
    %c0_i32 = arith.constant 0 : i32
    %17 = vector.broadcast %c0_i32 : i32 to vector<1x1024xi32>
    %18 = arith.cmpi sge, %16, %17 : vector<1x1024xi32>
    %c-2_i32_11 = arith.constant -2 : i32
    %19 = vector.broadcast %c-2_i32_11 : i32 to vector<1x1024xi32>
    %20 = arith.addi %13, %19 : vector<1x1024xi32>
    %c128_i32 = arith.constant 128 : i32
    %21 = vector.broadcast %c128_i32 : i32 to vector<1x1024xi32>
    %22 = arith.cmpi slt, %20, %21 : vector<1x1024xi32>
    %23 = arith.andi %18, %22 : vector<1x1024xi1>
    %24 = arith.extui %23 : vector<1x1024xi1> to vector<1x1024xi32>
    %25 = arith.sitofp %24 : vector<1x1024xi32> to vector<1x1024xf32>
    %26 = vector.broadcast %25 : vector<1x1024xf32> to vector<8x1024xf32>
    %27 = arith.mulf %14, %26 : vector<8x1024xf32>
    %28 = vector.extract_strided_slice %9 {offsets = [0, 0], sizes = [8, 1], strides = [1, 1]} : vector<8x5xf32> to vector<8x1xf32>
    %29 = vector.broadcast %28 : vector<8x1xf32> to vector<8x1024xf32>
    %30 = arith.mulf %27, %29 : vector<8x1024xf32>
    %31 = vector.broadcast %10 : vector<8x1xf32> to vector<8x1024xf32>
    %32 = arith.addf %30, %31 : vector<8x1024xf32>
    %c1_i32 = arith.constant 1 : i32
    %33 = tpu.dynamic_rotate %8 by %c1_i32 dim 1 : vector<8x1024xf32>, i32 -> vector<8x1024xf32>
    %c-1_i32 = arith.constant -1 : i32
    %34 = vector.broadcast %c-1_i32 : i32 to vector<1x1024xi32>
    %35 = arith.addi %13, %34 : vector<1x1024xi32>
    %c0_i32_12 = arith.constant 0 : i32
    %36 = vector.broadcast %c0_i32_12 : i32 to vector<1x1024xi32>
    %37 = arith.cmpi sge, %35, %36 : vector<1x1024xi32>
    %c-1_i32_13 = arith.constant -1 : i32
    %38 = vector.broadcast %c-1_i32_13 : i32 to vector<1x1024xi32>
    %39 = arith.addi %13, %38 : vector<1x1024xi32>
    %c128_i32_14 = arith.constant 128 : i32
    %40 = vector.broadcast %c128_i32_14 : i32 to vector<1x1024xi32>
    %41 = arith.cmpi slt, %39, %40 : vector<1x1024xi32>
    %42 = arith.andi %37, %41 : vector<1x1024xi1>
    %43 = arith.extui %42 : vector<1x1024xi1> to vector<1x1024xi32>
    %44 = arith.sitofp %43 : vector<1x1024xi32> to vector<1x1024xf32>
    %45 = vector.broadcast %44 : vector<1x1024xf32> to vector<8x1024xf32>
    %46 = arith.mulf %33, %45 : vector<8x1024xf32>
    %47 = vector.extract_strided_slice %9 {offsets = [0, 1], sizes = [8, 1], strides = [1, 1]} : vector<8x5xf32> to vector<8x1xf32>
    %48 = vector.broadcast %47 : vector<8x1xf32> to vector<8x1024xf32>
    %49 = arith.mulf %46, %48 : vector<8x1024xf32>
    %50 = arith.addf %32, %49 : vector<8x1024xf32>
    %51 = vector.extract_strided_slice %9 {offsets = [0, 2], sizes = [8, 1], strides = [1, 1]} : vector<8x5xf32> to vector<8x1xf32>
    %52 = vector.broadcast %51 : vector<8x1xf32> to vector<8x1024xf32>
    %53 = arith.mulf %8, %52 : vector<8x1024xf32>
    %54 = arith.addf %50, %53 : vector<8x1024xf32>
    %c1023_i32 = arith.constant 1023 : i32
    %55 = tpu.dynamic_rotate %8 by %c1023_i32 dim 1 : vector<8x1024xf32>, i32 -> vector<8x1024xf32>
    %c1_i32_15 = arith.constant 1 : i32
    %56 = vector.broadcast %c1_i32_15 : i32 to vector<1x1024xi32>
    %57 = arith.addi %13, %56 : vector<1x1024xi32>
    %c0_i32_16 = arith.constant 0 : i32
    %58 = vector.broadcast %c0_i32_16 : i32 to vector<1x1024xi32>
    %59 = arith.cmpi sge, %57, %58 : vector<1x1024xi32>
    %c1_i32_17 = arith.constant 1 : i32
    %60 = vector.broadcast %c1_i32_17 : i32 to vector<1x1024xi32>
    %61 = arith.addi %13, %60 : vector<1x1024xi32>
    %c128_i32_18 = arith.constant 128 : i32
    %62 = vector.broadcast %c128_i32_18 : i32 to vector<1x1024xi32>
    %63 = arith.cmpi slt, %61, %62 : vector<1x1024xi32>
    %64 = arith.andi %59, %63 : vector<1x1024xi1>
    %65 = arith.extui %64 : vector<1x1024xi1> to vector<1x1024xi32>
    %66 = arith.sitofp %65 : vector<1x1024xi32> to vector<1x1024xf32>
    %67 = vector.broadcast %66 : vector<1x1024xf32> to vector<8x1024xf32>
    %68 = arith.mulf %55, %67 : vector<8x1024xf32>
    %69 = vector.extract_strided_slice %9 {offsets = [0, 3], sizes = [8, 1], strides = [1, 1]} : vector<8x5xf32> to vector<8x1xf32>
    %70 = vector.broadcast %69 : vector<8x1xf32> to vector<8x1024xf32>
    %71 = arith.mulf %68, %70 : vector<8x1024xf32>
    %72 = arith.addf %54, %71 : vector<8x1024xf32>
    %c1022_i32 = arith.constant 1022 : i32
    %73 = tpu.dynamic_rotate %8 by %c1022_i32 dim 1 : vector<8x1024xf32>, i32 -> vector<8x1024xf32>
    %c2_i32_19 = arith.constant 2 : i32
    %74 = vector.broadcast %c2_i32_19 : i32 to vector<1x1024xi32>
    %75 = arith.addi %13, %74 : vector<1x1024xi32>
    %c0_i32_20 = arith.constant 0 : i32
    %76 = vector.broadcast %c0_i32_20 : i32 to vector<1x1024xi32>
    %77 = arith.cmpi sge, %75, %76 : vector<1x1024xi32>
    %c2_i32_21 = arith.constant 2 : i32
    %78 = vector.broadcast %c2_i32_21 : i32 to vector<1x1024xi32>
    %79 = arith.addi %13, %78 : vector<1x1024xi32>
    %c128_i32_22 = arith.constant 128 : i32
    %80 = vector.broadcast %c128_i32_22 : i32 to vector<1x1024xi32>
    %81 = arith.cmpi slt, %79, %80 : vector<1x1024xi32>
    %82 = arith.andi %77, %81 : vector<1x1024xi1>
    %83 = arith.extui %82 : vector<1x1024xi1> to vector<1x1024xi32>
    %84 = arith.sitofp %83 : vector<1x1024xi32> to vector<1x1024xf32>
    %85 = vector.broadcast %84 : vector<1x1024xf32> to vector<8x1024xf32>
    %86 = arith.mulf %73, %85 : vector<8x1024xf32>
    %87 = vector.extract_strided_slice %9 {offsets = [0, 4], sizes = [8, 1], strides = [1, 1]} : vector<8x5xf32> to vector<8x1xf32>
    %88 = vector.broadcast %87 : vector<8x1xf32> to vector<8x1024xf32>
    %89 = arith.mulf %86, %88 : vector<8x1024xf32>
    %90 = arith.addf %72, %89 : vector<8x1024xf32>
    %cst_23 = arith.constant 0.000000e+00 : f32
    %91 = vector.broadcast %cst_23 : f32 to vector<8x1024xf32>
    %92 = arith.maximumf %90, %91 : vector<8x1024xf32>
    %c0_24 = arith.constant 0 : index
    %c0_25 = arith.constant 0 : index
    %93 = vector.load %arg7[%c0_24, %c0_25] : memref<4x8xf32, #tpu.memory_space<vmem>>, vector<4x8xf32>
    %cst_26 = arith.constant dense<0.000000e+00> : vector<4x1024xf32>
    %94 = tpu.matmul %93, %92, %cst_26 {dimension_numbers = #tpu.dot_dimension_numbers<[1], [0], [0], [1], [0, 0, 1, 1], [], []>} : vector<4x8xf32>, vector<8x1024xf32>, vector<4x1024xf32> -> vector<4x1024xf32>
    %c0_27 = arith.constant 0 : index
    %c0_28 = arith.constant 0 : index
    %95 = vector.load %arg8[%c0_27, %c0_28] : memref<4x1xf32, #tpu.memory_space<vmem>>, vector<4x1xf32>
    %96 = vector.broadcast %95 : vector<4x1xf32> to vector<4x1024xf32>
    %97 = arith.addf %94, %96 : vector<4x1024xf32>
    %98 = arith.addf %1, %97 : vector<4x1024xf32>
    %c0_29 = arith.constant 0 : index
    %c0_30 = arith.constant 0 : index
    %c0_31 = arith.constant 0 : index
    %99 = vector.load %arg9[%c0_29, %c0_30, %c0_31] : memref<1x4x1024xf32, #tpu.memory_space<vmem>>, vector<1x4x1024xf32>
    %100 = vector.shape_cast %99 : vector<1x4x1024xf32> to vector<4x1024xf32>
    %101 = vector.shape_cast %98 : vector<4x1024xf32> to vector<1x4x1024xf32>
    tpu.vector_store %arg9[%c0_29, %c0_30, %c0_31], %101 {strides = array<i32>} : memref<1x4x1024xf32, #tpu.memory_space<vmem>>, vector<1x4x1024xf32>,
    return
  }
  func.func @transform_0(%arg0: i32, %arg1: i32) -> (i32, i32, i32) {
    %c0_i32 = arith.constant 0 : i32
    %c0_i32_0 = arith.constant 0 : i32
    return %arg0, %c0_i32, %arg1 : i32, i32, i32
  }
  func.func @transform_1(%arg0: i32, %arg1: i32) -> (i32, i32) {
    %c0_i32 = arith.constant 0 : i32
    %c0_i32_0 = arith.constant 0 : i32
    %c0_i32_1 = arith.constant 0 : i32
    return %c0_i32, %c0_i32_0 : i32, i32
  }
  func.func @transform_2(%arg0: i32, %arg1: i32) -> (i32, i32) {
    %c0_i32 = arith.constant 0 : i32
    %c0_i32_0 = arith.constant 0 : i32
    %c0_i32_1 = arith.constant 0 : i32
    return %c0_i32, %c0_i32_0 : i32, i32
  }
  func.func @transform_3(%arg0: i32, %arg1: i32) -> (i32, i32) {
    %c0_i32 = arith.constant 0 : i32
    %c0_i32_0 = arith.constant 0 : i32
    %c0_i32_1 = arith.constant 0 : i32
    return %c0_i32, %c0_i32_0 : i32, i32
  }
  func.func @transform_4(%arg0: i32, %arg1: i32) -> (i32, i32) {
    %c0_i32 = arith.constant 0 : i32
    %c0_i32_0 = arith.constant 0 : i32
    %c0_i32_1 = arith.constant 0 : i32
    return %c0_i32, %c0_i32_0 : i32, i32
  }
  func.func @transform_5(%arg0: i32, %arg1: i32) -> (i32, i32) {
    %c0_i32 = arith.constant 0 : i32
    %c0_i32_0 = arith.constant 0 : i32
    %c0_i32_1 = arith.constant 0 : i32
    return %c0_i32, %c0_i32_0 : i32, i32
  }
  func.func @transform_6(%arg0: i32, %arg1: i32) -> (i32, i32) {
    %c0_i32 = arith.constant 0 : i32
    %c0_i32_0 = arith.constant 0 : i32
    %c0_i32_1 = arith.constant 0 : i32
    return %c0_i32, %c0_i32_0 : i32, i32
  }
  func.func @transform_7(%arg0: i32, %arg1: i32) -> (i32, i32, i32) {
    %c0_i32 = arith.constant 0 : i32
    %c0_i32_0 = arith.constant 0 : i32
    return %arg0, %c0_i32, %arg1 : i32, i32, i32
  }
}

</mosaic_0001>

<llo_original>
// kernel: tpu_custom_call.1
$region0: #{tpu_custom_call.1}
  #allocation0 [shape = 'u32[]', space=smem, size = 0x4, offset = 0x4, fixed_abs, tag = 'smem constant byte address 0x4 - core index']
  #allocation1 [shape = 'u32[144,128]{1,0:T(1,128)}', space=vmem, size = 0x12000, scoped, tag = 'internal scratch']
  %s0 = inlined_call_operand.hbm [shape: f32[2,4,1024], index: 0, kind: input, shape index: {}]
  %s1 = inlined_call_operand.vmem [shape: f32[8,4], index: 1, kind: input, shape index: {}]
  %s2 = inlined_call_operand.vmem [shape: f32[8,1], index: 2, kind: input, shape index: {}]
  %s3 = inlined_call_operand.vmem [shape: f32[8,5], index: 3, kind: input, shape index: {}]
  %s4 = inlined_call_operand.vmem [shape: f32[8,1], index: 4, kind: input, shape index: {}]
  %s5 = inlined_call_operand.vmem [shape: f32[4,8], index: 5, kind: input, shape index: {}]
  %s6 = inlined_call_operand.vmem [shape: f32[4,1], index: 6, kind: input, shape index: {}]
  %s7 = inlined_call_operand.hbm [shape: f32[2,4,1024], index: 7, kind: output, shape index: {}]
  %s8 = sld [smem:[#allocation0]]
  $region65: #{tpu_custom_call.1} parent=0
    _
  %s10 = ssub.s32 1, %s8
  %s11 = scalar_select 0, %s10, %s8
  $region1: #{tpu_custom_call.1} parent=0
    #allocation2 [shape = 'u8[32768]{0}', space=vmem, size = 0x8000, scoped, tag = 'input window, operand 0']
    #allocation3 [shape = 's32[2]{0}', space=sflag, size = 0x8, scoped, tag = 'scoped memory for tpu_custom_call.1']
    #allocation4 [shape = 's32[2]{0}', space=sflag, size = 0x8, scoped, tag = 'scoped memory for tpu_custom_call.1']
    #allocation5 [shape = 'u8[32768]{0}', space=vmem, size = 0x8000, scoped, tag = 'output window, operand 0']
    %12 = vsyncpa [#allocation3], 0
    %s13 = scalar_lea.sflag [#allocation3], 1
    %14 = vsyncpa %s13, 0
    %15 = vsyncpa [#allocation4], 0
    %s16 = scalar_lea.sflag [#allocation4], 1
    %17 = vsyncpa %s16, 0
    loop: start=0, step=1, limit=4
    $region2: #{tpu_custom_call.1} parent=1 // loop_pre_header
      _
    $region3: #{tpu_custom_call.1} parent=1 // loop_header
      %s19 = sphi 0, %s23
      %p20 = scmp.ge.s32.totalorder %s19, 4
      %s26 = sphi 0, %s38
      %s27 = sphi 0, %s34
      %s28 = sphi 0, %s26
      %s29 = sphi 0, %s27
      %s30 = sphi 0, %s28
      %s31 = sphi 0, %s29
      %s43 = sphi 0, %s45
      %s46 = sphi 0, %s43
      %s47 = sphi 0, %s46
      %s63 = sphi 0, %s47
      %s67 = sphi 0, %s67
      %s69 = sphi 0, %s67
      %s70 = sphi 0, %s69
      %s84 = sphi 0, %s70
      %s88 = sphi 0, %s88
      %s90 = sphi 0, %s88
      %s91 = sphi 0, %s90
      %s105 = sphi 0, %s91
      %s109 = sphi 0, %s109
      %s111 = sphi 0, %s109
      %s112 = sphi 0, %s111
      %s126 = sphi 0, %s112
      %s130 = sphi 0, %s130
      %s132 = sphi 0, %s130
      %s133 = sphi 0, %s132
      %s147 = sphi 0, %s133
      %s151 = sphi 0, %s151
      %s153 = sphi 0, %s151
      %s154 = sphi 0, %s153
      %s168 = sphi 0, %s154
      %s172 = sphi 0, %s172
      %s174 = sphi 0, %s172
      %s175 = sphi 0, %s174
      %s189 = sphi 0, %s175
      %s197 = sphi 0, %s199
      %s200 = sphi 0, %s197
      %s201 = sphi 0, %s200
      %s217 = sphi 0, %s201
    $region4: #{tpu_custom_call.1} parent=1 // loop_header_branch
      %22 = sbr.rel (%p20) target = $region8
    $region5: #{tpu_custom_call.1} parent=1 // loop_body
      %s24 = ssub.s32 %s19, 1
      %s25 = ssub.s32 %s19, 2
      %s32 = sadd.s32 1, %s27
      %p33 = scmp.ge.s32.totalorder %s32, 1
      %s34 = scalar_select %p33, 0, %s32
      %s35 = sadd.s32 1, %s26
      %s36 = scalar_select %p33, %s35, %s26
      %p37 = scmp.ge.s32.totalorder %s36, 2
      %s38 = scalar_select %p37, 0, %s36
      %s39 = ssub.s32 %s26, %s38
      %s40 = ssub.s32 %s27, %s34
      %s41 = sor.u32 %s39, %s40
      %p42 = scmp.eq.s32.totalorder %s41, 0
      %s44 = sadd.s32 %s43, 1
      %s45 = scalar_select %p42, %s43, %s44
      %p48 = pneg %p42
      %p49 = scmp.eq.s32.totalorder %s19, 1
      %p50 = por %p48, %p49
      %p51 = scmp.ne.s32.totalorder %s43, %s46
      %p52 = scmp.eq.s32.totalorder %s19, 0
      %p53 = por %p51, %p52
      %p54 = scmp.ne.s32.totalorder %s43, %s46
      %p55 = scmp.eq.s32.totalorder %s24, 1
      %p56 = por %p54, %p55
      %p57 = scmp.ne.s32.totalorder %s46, %s47
      %p58 = scmp.eq.s32.totalorder %s24, 0
      %p59 = por %p57, %p58
      %p60 = scmp.ne.s32.totalorder %s46, %s47
      %p61 = scmp.eq.s32.totalorder %s25, 1
      %p62 = por %p60, %p61
      %p64 = scmp.ne.s32.totalorder %s47, %s63
      %p65 = scmp.eq.s32.totalorder %s25, 0
      %p66 = por %p64, %p65
      %s68 = sadd.s32 %s67, 1
      %p71 = scmp.eq.s32.totalorder %s19, 1
      %p72 = scmp.ne.s32.totalorder %s67, %s69
      %p73 = scmp.eq.s32.totalorder %s19, 0
      %p74 = por %p72, %p73
      %p75 = scmp.ne.s32.totalorder %s67, %s69
      %p76 = scmp.eq.s32.totalorder %s24, 1
      %p77 = por %p75, %p76
      %p78 = scmp.ne.s32.totalorder %s69, %s70
      %p79 = scmp.eq.s32.totalorder %s24, 0
      %p80 = por %p78, %p79
      %p81 = scmp.ne.s32.totalorder %s69, %s70
      %p82 = scmp.eq.s32.totalorder %s25, 1
      %p83 = por %p81, %p82
      %p85 = scmp.ne.s32.totalorder %s70, %s84
      %p86 = scmp.eq.s32.totalorder %s25, 0
      %p87 = por %p85, %p86
      %s89 = sadd.s32 %s88, 1
      %p92 = scmp.eq.s32.totalorder %s19, 1
      %p93 = scmp.ne.s32.totalorder %s88, %s90
      %p94 = scmp.eq.s32.totalorder %s19, 0
      %p95 = por %p93, %p94
      %p96 = scmp.ne.s32.totalorder %s88, %s90
      %p97 = scmp.eq.s32.totalorder %s24, 1
      %p98 = por %p96, %p97
      %p99 = scmp.ne.s32.totalorder %s90, %s91
      %p100 = scmp.eq.s32.totalorder %s24, 0
      %p101 = por %p99, %p100
      %p102 = scmp.ne.s32.totalorder %s90, %s91
      %p103 = scmp.eq.s32.totalorder %s25, 1
      %p104 = por %p102, %p103
      %p106 = scmp.ne.s32.totalorder %s91, %s105
      %p107 = scmp.eq.s32.totalorder %s25, 0
      %p108 = por %p106, %p107
      %s110 = sadd.s32 %s109, 1
      %p113 = scmp.eq.s32.totalorder %s19, 1
      %p114 = scmp.ne.s32.totalorder %s109, %s111
      %p115 = scmp.eq.s32.totalorder %s19, 0
      %p116 = por %p114, %p115
      %p117 = scmp.ne.s32.totalorder %s109, %s111
      %p118 = scmp.eq.s32.totalorder %s24, 1
      %p119 = por %p117, %p118
      %p120 = scmp.ne.s32.totalorder %s111, %s112
      %p121 = scmp.eq.s32.totalorder %s24, 0
      %p122 = por %p120, %p121
      %p123 = scmp.ne.s32.totalorder %s111, %s112
      %p124 = scmp.eq.s32.totalorder %s25, 1
      %p125 = por %p123, %p124
      %p127 = scmp.ne.s32.totalorder %s112, %s126
      %p128 = scmp.eq.s32.totalorder %s25, 0
      %p129 = por %p127, %p128
      %s131 = sadd.s32 %s130, 1
      %p134 = scmp.eq.s32.totalorder %s19, 1
      %p135 = scmp.ne.s32.totalorder %s130, %s132
      %p136 = scmp.eq.s32.totalorder %s19, 0
      %p137 = por %p135, %p136
      %p138 = scmp.ne.s32.totalorder %s130, %s132
      %p139 = scmp.eq.s32.totalorder %s24, 1
      %p140 = por %p138, %p139
      %p141 = scmp.ne.s32.totalorder %s132, %s133
      %p142 = scmp.eq.s32.totalorder %s24, 0
      %p143 = por %p141, %p142
      %p144 = scmp.ne.s32.totalorder %s132, %s133
      %p145 = scmp.eq.s32.totalorder %s25, 1
      %p146 = por %p144, %p145
      %p148 = scmp.ne.s32.totalorder %s133, %s147
      %p149 = scmp.eq.s32.totalorder %s25, 0
      %p150 = por %p148, %p149
      %s152 = sadd.s32 %s151, 1
      %p155 = scmp.eq.s32.totalorder %s19, 1
      %p156 = scmp.ne.s32.totalorder %s151, %s153
      %p157 = scmp.eq.s32.totalorder %s19, 0
      %p158 = por %p156, %p157
      %p159 = scmp.ne.s32.totalorder %s151, %s153
      %p160 = scmp.eq.s32.totalorder %s24, 1
      %p161 = por %p159, %p160
      %p162 = scmp.ne.s32.totalorder %s153, %s154
      %p163 = scmp.eq.s32.totalorder %s24, 0
      %p164 = por %p162, %p163
      %p165 = scmp.ne.s32.totalorder %s153, %s154
      %p166 = scmp.eq.s32.totalorder %s25, 1
      %p167 = por %p165, %p166
      %p169 = scmp.ne.s32.totalorder %s154, %s168
      %p170 = scmp.eq.s32.totalorder %s25, 0
      %p171 = por %p169, %p170
      %s173 = sadd.s32 %s172, 1
      %p176 = scmp.eq.s32.totalorder %s19, 1
      %p177 = scmp.ne.s32.totalorder %s172, %s174
      %p178 = scmp.eq.s32.totalorder %s19, 0
      %p179 = por %p177, %p178
      %p180 = scmp.ne.s32.totalorder %s172, %s174
      %p181 = scmp.eq.s32.totalorder %s24, 1
      %p182 = por %p180, %p181
      %p183 = scmp.ne.s32.totalorder %s174, %s175
      %p184 = scmp.eq.s32.totalorder %s24, 0
      %p185 = por %p183, %p184
      %p186 = scmp.ne.s32.totalorder %s174, %s175
      %p187 = scmp.eq.s32.totalorder %s25, 1
      %p188 = por %p186, %p187
      %p190 = scmp.ne.s32.totalorder %s175, %s189
      %p191 = scmp.eq.s32.totalorder %s25, 0
      %p192 = por %p190, %p191
      %s193 = ssub.s32 %s26, %s38
      %s194 = ssub.s32 %s27, %s34
      %s195 = sor.u32 %s193, %s194
      %p196 = scmp.eq.s32.totalorder %s195, 0
      %s198 = sadd.s32 %s197, 1
      %s199 = scalar_select %p196, %s197, %s198
      %p202 = pneg %p196
      %p203 = scmp.eq.s32.totalorder %s19, 1
      %p204 = por %p202, %p203
      %p205 = scmp.ne.s32.totalorder %s197, %s200
      %p206 = scmp.eq.s32.totalorder %s19, 0
      %p207 = por %p205, %p206
      %p208 = scmp.ne.s32.totalorder %s197, %s200
      %p209 = scmp.eq.s32.totalorder %s24, 1
      %p210 = por %p208, %p209
      %p211 = scmp.ne.s32.totalorder %s200, %s201
      %p212 = scmp.eq.s32.totalorder %s24, 0
      %p213 = por %p211, %p212
      %p214 = scmp.ne.s32.totalorder %s200, %s201
      %p215 = scmp.eq.s32.totalorder %s25, 1
      %p216 = por %p214, %p215
      %p218 = scmp.ne.s32.totalorder %s201, %s217
      %p219 = scmp.eq.s32.totalorder %s25, 0
      %p220 = por %p218, %p219
      %p221 = scmp.le.s32.totalorder 1, %s19
      %p222 = scmp.lt.s32.totalorder %s19, 3
      %p223 = pnand %p221, %p222
      %p224 = pneg %p223
      // Predicated region
      $region9: #{tpu_custom_call.1} parent=5 // pred_check
        _
      $region10: #{tpu_custom_call.1} parent=5 // pred_check_branch
        %226 = sbr.rel (%p223) target = $region12
      $region11: #{tpu_custom_call.1} parent=5 // pred_region
        %s227 = ssub.s32 %s19, 1
        // Predicated region
        $region13: #{tpu_custom_call.1} parent=11 // pred_check
          %p228 = pneg %p80
        $region14: #{tpu_custom_call.1} parent=11 // pred_check_branch
          %230 = sbr.rel (%p228) target = $region16
        $region15: #{tpu_custom_call.1} parent=11 // pred_region
          _
        $region16: #{tpu_custom_call.1} parent=11 // pred_fallthru
          _
        // Predicated region
        $region17: #{tpu_custom_call.1} parent=11 // pred_check
          %p231 = pneg %p101
        $region18: #{tpu_custom_call.1} parent=11 // pred_check_branch
          %233 = sbr.rel (%p231) target = $region20
        $region19: #{tpu_custom_call.1} parent=11 // pred_region
          _
        $region20: #{tpu_custom_call.1} parent=11 // pred_fallthru
          _
        // Predicated region
        $region21: #{tpu_custom_call.1} parent=11 // pred_check
          %p234 = pneg %p122
        $region22: #{tpu_custom_call.1} parent=11 // pred_check_branch
          %236 = sbr.rel (%p234) target = $region24
        $region23: #{tpu_custom_call.1} parent=11 // pred_region
          _
        $region24: #{tpu_custom_call.1} parent=11 // pred_fallthru
          _
        // Predicated region
        $region25: #{tpu_custom_call.1} parent=11 // pred_check
          %p237 = pneg %p143
        $region26: #{tpu_custom_call.1} parent=11 // pred_check_branch
          %239 = sbr.rel (%p237) target = $region28
        $region27: #{tpu_custom_call.1} parent=11 // pred_region
          _
        $region28: #{tpu_custom_call.1} parent=11 // pred_fallthru
          _
        // Predicated region
        $region29: #{tpu_custom_call.1} parent=11 // pred_check
          %p240 = pneg %p164
        $region30: #{tpu_custom_call.1} parent=11 // pred_check_branch
          %242 = sbr.rel (%p240) target = $region32
        $region31: #{tpu_custom_call.1} parent=11 // pred_region
          _
        $region32: #{tpu_custom_call.1} parent=11 // pred_fallthru
          _
        // Predicated region
        $region33: #{tpu_custom_call.1} parent=11 // pred_check
          %p243 = pneg %p185
        $region34: #{tpu_custom_call.1} parent=11 // pred_check_branch
          %245 = sbr.rel (%p243) target = $region36
        $region35: #{tpu_custom_call.1} parent=11 // pred_region
          _
        $region36: #{tpu_custom_call.1} parent=11 // pred_fallthru
          _
      $region12: #{tpu_custom_call.1} parent=5 // pred_fallthru
        _
      %p246 = scmp.lt.s32.totalorder %s19, 2
      // Predicated region
      $region37: #{tpu_custom_call.1} parent=5 // pred_check
        %p247 = pneg %p246
      $region38: #{tpu_custom_call.1} parent=5 // pred_check_branch
        %249 = sbr.rel (%p247) target = $region40
      $region39: #{tpu_custom_call.1} parent=5 // pred_region
        // Predicated region
        $region41: #{tpu_custom_call.1} parent=39 // pred_check
          %p250 = pneg %p53
        $region42: #{tpu_custom_call.1} parent=39 // pred_check_branch
          %252 = sbr.rel (%p250) target = $region44
        $region43: #{tpu_custom_call.1} parent=39 // pred_region
          %s253 = sand.u32 %s43, 1
          %s254 = scalar_lea.sflag [#allocation3], %s253
          %s255 = sand.u32 %s43, 1
          %s256 = smul.addr %s255, 32
          %s257 = scalar_lea.vmem [#allocation2], %s256
          %s258 = smul.u32 8, %s27
          %s260 = ssub.s32 512, 512
          %261 = vsyncadd %s254, %s260
          %s262 = smul.addr %s26, 8
          %s263 = sadd.s32 %s258, %s262
          %s264 = smul.addr %s263, 64
          %s265 = scalar_lea.hbm %s0, %s264
          %s267 = sshll.u32 %s257, 4
          %s268 = int_to_ptr.vmem [resolvable:$true] %s267
          %270 = dma.hbm_to_vmem [thread:$0]  %s265, 512, %s268, %s254
        $region44: #{tpu_custom_call.1} parent=39 // pred_fallthru
          _
      $region40: #{tpu_custom_call.1} parent=5 // pred_fallthru
        _
      %p271 = scmp.le.s32.totalorder 1, %s19
      %p272 = scmp.lt.s32.totalorder %s19, 3
      %p273 = pnand %p271, %p272
      %p274 = pneg %p273
      // Predicated region
      $region45: #{tpu_custom_call.1} parent=5 // pred_check
        _
      $region46: #{tpu_custom_call.1} parent=5 // pred_check_branch
        %276 = sbr.rel (%p273) target = $region48
      $region47: #{tpu_custom_call.1} parent=5 // pred_region
        %s277 = ssub.s32 %s19, 1
        %s278 = sand.u32 %s46, 1
        %s279 = scalar_lea.sflag [#allocation3], %s278
        %s280 = sand.u32 %s46, 1
        %s281 = smul.addr %s280, 32
        %s282 = scalar_lea.vmem [#allocation2], %s281
        // Predicated region
        $region49: #{tpu_custom_call.1} parent=47 // pred_check
          %p283 = pneg %p59
        $region50: #{tpu_custom_call.1} parent=47 // pred_check_branch
          %285 = sbr.rel (%p283) target = $region52
        $region51: #{tpu_custom_call.1} parent=47 // pred_region
          %286 = dma.done %s279, 512
        $region52: #{tpu_custom_call.1} parent=47 // pred_fallthru
          _
        %s287 = sand.u32 %s46, 1
        %s288 = scalar_lea.sflag [#allocation3], %s287
        %s289 = sand.u32 %s46, 1
        %s290 = smul.addr %s289, 32
        %s291 = scalar_lea.vmem [#allocation2], %s290
        %p292 = pneg %p59
        %p293 = pneg %p56
        %p294 = pneg %p80
        %p295 = pneg %p77
        %p296 = pneg %p101
        %p297 = pneg %p98
        %p298 = pneg %p122
        %p299 = pneg %p119
        %p300 = pneg %p143
        %p301 = pneg %p140
        %p302 = pneg %p164
        %p303 = pneg %p161
        %p304 = pneg %p185
        %p305 = pneg %p182
        %p306 = pneg %p213
        %p307 = pneg %p210
        %s308 = sand.u32 %s200, 1
        %s309 = scalar_lea.sflag [#allocation4], %s308
        %s310 = sand.u32 %s200, 1
        %s311 = smul.addr %s310, 32
        %s312 = scalar_lea.vmem [#allocation5], %s311
        %s313 = smul.u32 8, %s29
        %s314 = smul.u32 8, %s29
        %v315 = vld [vmem:[%s282] sm:$0xff]
        %v316 = vld [vmem:[%s282 + $0x8] sm:$0xff]
        %v317 = vld [vmem:[%s282 + $0x10] sm:$0xff]
        %v318 = vld [vmem:[%s282 + $0x18] sm:$0xff]
        %v319 = vld [vmem:[%s1] sm:$0xff]
        %v320 = vld [vmem:[%s2] sm:$0xff]
        %322 = vset.pattern.permute.xlu0 0
        %323 = vperm.xlu0 %322, %v320
        %v324 = vpop.permute.xlu0 %323
        %v330 = vcombine.high %v315, %v315
        %v331 = vcombine.high %v316, %v316
        %v332 = vcombine.high %v317, %v317
        %v333 = vcombine.high %v318, %v318
        %vm334 = vcmask 31744
        %v336 = vsel %vm334, %v319, 0
        %vm338 = vcmask 1043456
        %v339 = vsel %vm338, %v315, 0
        %v341 = vsel %vm338, %v330, 0
        %v343 = vsel %vm338, %v316, 0
        %v345 = vsel %vm338, %v331, 0
        %v347 = vsel %vm338, %v317, 0
        %v349 = vsel %vm338, %v332, 0
        %v351 = vsel %vm338, %v318, 0
        %v353 = vsel %vm338, %v333, 0
        %355 = vmatprep.subr.mxu0 0.0
        %356 = vmatpush1.msra.mxu0 0.0
        %357 = vmatprep.subr.mxu0 0.0
        %358 = vmatpush1.msra.mxu0 0.0
        %359 = vmatprep.subr.mxu0 0.0
        %360 = vmatpush1.msra.mxu0 0.0
        %361 = vmatprep.subr.mxu0 0.0
        %362 = vmatpush1.msra.mxu0 0.0
        %363 = vmatprep.subr.mxu0 0.0
        %364 = vmatpush1.msra.mxu0 0.0
        %365 = vmatprep.subr.mxu0 0.0
        %366 = vmatpush1.msra.mxu0 0.0
        %367 = vmatprep.subr.mxu0 0.0
        %368 = vmatpush1.msra.mxu0 0.0
        %369 = vmatprep.subr.mxu0 0.0
        %370 = vmatpush1.msra.mxu0 0.0
        %371 = vmatprep.subr.mxu0 0.0
        %372 = vmatpush1.msra.mxu0 0.0
        %373 = vmatprep.subr.mxu0 0.0
        %374 = vmatpush1.msra.mxu0 0.0
        %375 = vmatprep.subr.mxu0 0.0
        %376 = vmatpush1.msra.mxu0 0.0
        %377 = vmatprep.subr.mxu0 0.0
        %378 = vmatpush1.msra.mxu0 0.0
        %379 = vmatprep.subr.mxu0 0.0
        %380 = vmatpush1.msra.mxu0 0.0
        %381 = vmatprep.subr.mxu0 0.0
        %382 = vmatpush1.msra.mxu0 0.0
        %383 = vmatprep.subr.mxu0 0.0
        %384 = vmatpush1.msra.mxu0 0.0
        %385 = vmatprep.subr.mxu0 %v341
        %386 = vmatpush1.msra.mxu0 %v339
        %387 = vmatprep.subr.mxu0 0.0
        %388 = vmatpush2.msra.mxu0 0.0
        %389 = vmatprep.subr.mxu0 0.0
        %390 = vmatpush2.msra.mxu0 0.0
        %391 = vmatprep.subr.mxu0 0.0
        %392 = vmatpush2.msra.mxu0 0.0
        %393 = vmatprep.subr.mxu0 0.0
        %394 = vmatpush2.msra.mxu0 0.0
        %395 = vmatprep.subr.mxu0 0.0
        %396 = vmatpush2.msra.mxu0 0.0
        %397 = vmatprep.subr.mxu0 0.0
        %398 = vmatpush2.msra.mxu0 0.0
        %399 = vmatprep.subr.mxu0 0.0
        %400 = vmatpush2.msra.mxu0 0.0
        %401 = vmatprep.subr.mxu0 0.0
        %402 = vmatpush2.msra.mxu0 0.0
        %403 = vmatprep.subr.mxu0 0.0
        %404 = vmatpush2.msra.mxu0 0.0
        %405 = vmatprep.subr.mxu0 0.0
        %406 = vmatpush2.msra.mxu0 0.0
        %407 = vmatprep.subr.mxu0 0.0
        %408 = vmatpush2.msra.mxu0 0.0
        %409 = vmatprep.subr.mxu0 0.0
        %410 = vmatpush2.msra.mxu0 0.0
        %411 = vmatprep.subr.mxu0 0.0
        %412 = vmatpush2.msra.mxu0 0.0
        %413 = vmatprep.subr.mxu0 0.0
        %414 = vmatpush2.msra.mxu0 0.0
        %415 = vmatprep.subr.mxu0 0.0
        %416 = vmatpush2.msra.mxu0 0.0
        %417 = vmatprep.subr.mxu0 0.0
        %418 = vmatpush2.msra.mxu0 0.0
        %419 = vmatprep.mubr.f32.mxu0 0.0
        %420 = vmatmul.mubr.f32.gmra.mxu0 %v336
        %v421 = vpop.f32.mrf.mxu0
        %v422 = vadd.f32 %v324, %v421
        %v423 = vpop.f32.mrf.mxu0
        %v424 = vadd.f32 %v324, %v423
        %425 = vdwg.mxu0
        %426 = vmatprep.subr.mxu0 0.0
        %427 = vmatpush1.msra.mxu0 0.0
        %428 = vmatprep.subr.mxu0 0.0
        %429 = vmatpush1.msra.mxu0 0.0
        %430 = vmatprep.subr.mxu0 0.0
        %431 = vmatpush1.msra.mxu0 0.0
        %432 = vmatprep.subr.mxu0 0.0
        %433 = vmatpush1.msra.mxu0 0.0
        %434 = vmatprep.subr.mxu0 0.0
        %435 = vmatpush1.msra.mxu0 0.0
        %436 = vmatprep.subr.mxu0 0.0
        %437 = vmatpush1.msra.mxu0 0.0
        %438 = vmatprep.subr.mxu0 0.0
        %439 = vmatpush1.msra.mxu0 0.0
        %440 = vmatprep.subr.mxu0 0.0
        %441 = vmatpush1.msra.mxu0 0.0
        %442 = vmatprep.subr.mxu0 0.0
        %443 = vmatpush1.msra.mxu0 0.0
        %444 = vmatprep.subr.mxu0 0.0
        %445 = vmatpush1.msra.mxu0 0.0
        %446 = vmatprep.subr.mxu0 0.0
        %447 = vmatpush1.msra.mxu0 0.0
        %448 = vmatprep.subr.mxu0 0.0
        %449 = vmatpush1.msra.mxu0 0.0
        %450 = vmatprep.subr.mxu0 0.0
        %451 = vmatpush1.msra.mxu0 0.0
        %452 = vmatprep.subr.mxu0 0.0
        %453 = vmatpush1.msra.mxu0 0.0
        %454 = vmatprep.subr.mxu0 0.0
        %455 = vmatpush1.msra.mxu0 0.0
        %456 = vmatprep.subr.mxu0 %v345
        %457 = vmatpush1.msra.mxu0 %v343
        %458 = vmatprep.subr.mxu0 0.0
        %459 = vmatpush2.msra.mxu0 0.0
        %460 = vmatprep.subr.mxu0 0.0
        %461 = vmatpush2.msra.mxu0 0.0
        %462 = vmatprep.subr.mxu0 0.0
        %463 = vmatpush2.msra.mxu0 0.0
        %464 = vmatprep.subr.mxu0 0.0
        %465 = vmatpush2.msra.mxu0 0.0
        %466 = vmatprep.subr.mxu0 0.0
        %467 = vmatpush2.msra.mxu0 0.0
        %468 = vmatprep.subr.mxu0 0.0
        %469 = vmatpush2.msra.mxu0 0.0
        %470 = vmatprep.subr.mxu0 0.0
        %471 = vmatpush2.msra.mxu0 0.0
        %472 = vmatprep.subr.mxu0 0.0
        %473 = vmatpush2.msra.mxu0 0.0
        %474 = vmatprep.subr.mxu0 0.0
        %475 = vmatpush2.msra.mxu0 0.0
        %476 = vmatprep.subr.mxu0 0.0
        %477 = vmatpush2.msra.mxu0 0.0
        %478 = vmatprep.subr.mxu0 0.0
        %479 = vmatpush2.msra.mxu0 0.0
        %480 = vmatprep.subr.mxu0 0.0
        %481 = vmatpush2.msra.mxu0 0.0
        %482 = vmatprep.subr.mxu0 0.0
        %483 = vmatpush2.msra.mxu0 0.0
        %484 = vmatprep.subr.mxu0 0.0
        %485 = vmatpush2.msra.mxu0 0.0
        %486 = vmatprep.subr.mxu0 0.0
        %487 = vmatpush2.msra.mxu0 0.0
        %488 = vmatprep.subr.mxu0 0.0
        %489 = vmatpush2.msra.mxu0 0.0
        %490 = vmatprep.mubr.f32.mxu0 0.0
        %491 = vmatmul.mubr.f32.gmra.mxu0 %v336
        %v492 = vpop.f32.mrf.mxu0
        %v493 = vadd.f32 %v324, %v492
        %v494 = vpop.f32.mrf.mxu0
        %v495 = vadd.f32 %v324, %v494
        %496 = vdwg.mxu0
        %497 = vmatprep.subr.mxu0 0.0
        %498 = vmatpush1.msra.mxu0 0.0
        %499 = vmatprep.subr.mxu0 0.0
        %500 = vmatpush1.msra.mxu0 0.0
        %501 = vmatprep.subr.mxu0 0.0
        %502 = vmatpush1.msra.mxu0 0.0
        %503 = vmatprep.subr.mxu0 0.0
        %504 = vmatpush1.msra.mxu0 0.0
        %505 = vmatprep.subr.mxu0 0.0
        %506 = vmatpush1.msra.mxu0 0.0
        %507 = vmatprep.subr.mxu0 0.0
        %508 = vmatpush1.msra.mxu0 0.0
        %509 = vmatprep.subr.mxu0 0.0
        %510 = vmatpush1.msra.mxu0 0.0
        %511 = vmatprep.subr.mxu0 0.0
        %512 = vmatpush1.msra.mxu0 0.0
        %513 = vmatprep.subr.mxu0 0.0
        %514 = vmatpush1.msra.mxu0 0.0
        %515 = vmatprep.subr.mxu0 0.0
        %516 = vmatpush1.msra.mxu0 0.0
        %517 = vmatprep.subr.mxu0 0.0
        %518 = vmatpush1.msra.mxu0 0.0
        %519 = vmatprep.subr.mxu0 0.0
        %520 = vmatpush1.msra.mxu0 0.0
        %521 = vmatprep.subr.mxu0 0.0
        %522 = vmatpush1.msra.mxu0 0.0
        %523 = vmatprep.subr.mxu0 0.0
        %524 = vmatpush1.msra.mxu0 0.0
        %525 = vmatprep.subr.mxu0 0.0
        %526 = vmatpush1.msra.mxu0 0.0
        %527 = vmatprep.subr.mxu0 %v349
        %528 = vmatpush1.msra.mxu0 %v347
        %529 = vmatprep.subr.mxu0 0.0
        %530 = vmatpush2.msra.mxu0 0.0
        %531 = vmatprep.subr.mxu0 0.0
        %532 = vmatpush2.msra.mxu0 0.0
        %533 = vmatprep.subr.mxu0 0.0
        %534 = vmatpush2.msra.mxu0 0.0
        %535 = vmatprep.subr.mxu0 0.0
        %536 = vmatpush2.msra.mxu0 0.0
        %537 = vmatprep.subr.mxu0 0.0
        %538 = vmatpush2.msra.mxu0 0.0
        %539 = vmatprep.subr.mxu0 0.0
        %540 = vmatpush2.msra.mxu0 0.0
        %541 = vmatprep.subr.mxu0 0.0
        %542 = vmatpush2.msra.mxu0 0.0
        %543 = vmatprep.subr.mxu0 0.0
        %544 = vmatpush2.msra.mxu0 0.0
        %545 = vmatprep.subr.mxu0 0.0
        %546 = vmatpush2.msra.mxu0 0.0
        %547 = vmatprep.subr.mxu0 0.0
        %548 = vmatpush2.msra.mxu0 0.0
        %549 = vmatprep.subr.mxu0 0.0
        %550 = vmatpush2.msra.mxu0 0.0
        %551 = vmatprep.subr.mxu0 0.0
        %552 = vmatpush2.msra.mxu0 0.0
        %553 = vmatprep.subr.mxu0 0.0
        %554 = vmatpush2.msra.mxu0 0.0
        %555 = vmatprep.subr.mxu0 0.0
        %556 = vmatpush2.msra.mxu0 0.0
        %557 = vmatprep.subr.mxu0 0.0
        %558 = vmatpush2.msra.mxu0 0.0
        %559 = vmatprep.subr.mxu0 0.0
        %560 = vmatpush2.msra.mxu0 0.0
        %561 = vmatprep.mubr.f32.mxu0 0.0
        %562 = vmatmul.mubr.f32.gmra.mxu0 %v336
        %v563 = vpop.f32.mrf.mxu0
        %v564 = vadd.f32 %v324, %v563
        %v565 = vpop.f32.mrf.mxu0
        %v566 = vadd.f32 %v324, %v565
        %567 = vdwg.mxu0
        %568 = vmatprep.subr.mxu0 0.0
        %569 = vmatpush1.msra.mxu0 0.0
        %570 = vmatprep.subr.mxu0 0.0
        %571 = vmatpush1.msra.mxu0 0.0
        %572 = vmatprep.subr.mxu0 0.0
        %573 = vmatpush1.msra.mxu0 0.0
        %574 = vmatprep.subr.mxu0 0.0
        %575 = vmatpush1.msra.mxu0 0.0
        %576 = vmatprep.subr.mxu0 0.0
        %577 = vmatpush1.msra.mxu0 0.0
        %578 = vmatprep.subr.mxu0 0.0
        %579 = vmatpush1.msra.mxu0 0.0
        %580 = vmatprep.subr.mxu0 0.0
        %581 = vmatpush1.msra.mxu0 0.0
        %582 = vmatprep.subr.mxu0 0.0
        %583 = vmatpush1.msra.mxu0 0.0
        %584 = vmatprep.subr.mxu0 0.0
        %585 = vmatpush1.msra.mxu0 0.0
        %586 = vmatprep.subr.mxu0 0.0
        %587 = vmatpush1.msra.mxu0 0.0
        %588 = vmatprep.subr.mxu0 0.0
        %589 = vmatpush1.msra.mxu0 0.0
        %590 = vmatprep.subr.mxu0 0.0
        %591 = vmatpush1.msra.mxu0 0.0
        %592 = vmatprep.subr.mxu0 0.0
        %593 = vmatpush1.msra.mxu0 0.0
        %594 = vmatprep.subr.mxu0 0.0
        %595 = vmatpush1.msra.mxu0 0.0
        %596 = vmatprep.subr.mxu0 0.0
        %597 = vmatpush1.msra.mxu0 0.0
        %598 = vmatprep.subr.mxu0 %v353
        %599 = vmatpush1.msra.mxu0 %v351
        %600 = vmatprep.subr.mxu0 0.0
        %601 = vmatpush2.msra.mxu0 0.0
        %602 = vmatprep.subr.mxu0 0.0
        %603 = vmatpush2.msra.mxu0 0.0
        %604 = vmatprep.subr.mxu0 0.0
        %605 = vmatpush2.msra.mxu0 0.0
        %606 = vmatprep.subr.mxu0 0.0
        %607 = vmatpush2.msra.mxu0 0.0
        %608 = vmatprep.subr.mxu0 0.0
        %609 = vmatpush2.msra.mxu0 0.0
        %610 = vmatprep.subr.mxu0 0.0
        %611 = vmatpush2.msra.mxu0 0.0
        %612 = vmatprep.subr.mxu0 0.0
        %613 = vmatpush2.msra.mxu0 0.0
        %614 = vmatprep.subr.mxu0 0.0
        %615 = vmatpush2.msra.mxu0 0.0
        %616 = vmatprep.subr.mxu0 0.0
        %617 = vmatpush2.msra.mxu0 0.0
        %618 = vmatprep.subr.mxu0 0.0
        %619 = vmatpush2.msra.mxu0 0.0
        %620 = vmatprep.subr.mxu0 0.0
        %621 = vmatpush2.msra.mxu0 0.0
        %622 = vmatprep.subr.mxu0 0.0
        %623 = vmatpush2.msra.mxu0 0.0
        %624 = vmatprep.subr.mxu0 0.0
        %625 = vmatpush2.msra.mxu0 0.0
        %626 = vmatprep.subr.mxu0 0.0
        %627 = vmatpush2.msra.mxu0 0.0
        %628 = vmatprep.subr.mxu0 0.0
        %629 = vmatpush2.msra.mxu0 0.0
        %630 = vmatprep.subr.mxu0 0.0
        %631 = vmatpush2.msra.mxu0 0.0
        %632 = vmatprep.mubr.f32.mxu0 0.0
        %633 = vmatmul.mubr.f32.gmra.mxu0 %v336
        %v634 = vpop.f32.mrf.mxu0
        %v635 = vadd.f32 %v324, %v634
        %v636 = vpop.f32.mrf.mxu0
        %v637 = vadd.f32 %v324, %v636
        %638 = vdwg.mxu0
        %v639 = vmax.f32 %v422, 0.0
        %v640 = vmax.f32 %v424, 0.0
        %v641 = vmax.f32 %v493, 0.0
        %v642 = vmax.f32 %v495, 0.0
        %v643 = vmax.f32 %v564, 0.0
        %v644 = vmax.f32 %v566, 0.0
        %v645 = vmax.f32 %v635, 0.0
        %v646 = vmax.f32 %v637, 0.0
        %v647 = vld [vmem:[%s3] sm:$0xff]
        %v648 = vld [vmem:[%s4] sm:$0xff]
        %v649 = vlaneseq
        %v650 = vand.u32 %v649, 127
        %v651 = vadd.s32 %v650, 128
        %v652 = vadd.s32 %v650, 256
        %v653 = vadd.s32 %v650, 384
        %v654 = vadd.s32 %v650, 512
        %v655 = vadd.s32 %v650, 640
        %v656 = vadd.s32 %v650, 768
        %v657 = vadd.s32 %v650, 896
        %v658 = vand.u32 %v650, 127
        %v659 = vand.u32 %v651, 127
        %v660 = vand.u32 %v652, 127
        %v661 = vand.u32 %v653, 127
        %v662 = vand.u32 %v654, 127
        %v663 = vand.u32 %v655, 127
        %v664 = vand.u32 %v656, 127
        %v665 = vand.u32 %v657, 127
        %666 = vrot.lane.b32.xlu0 %v639, 2
        %v667 = vpop.permute.xlu0 %666
        %668 = vrot.lane.b32.xlu0 %v640, 2
        %v669 = vpop.permute.xlu0 %668
        %670 = vrot.lane.b32.xlu0 %v641, 2
        %v671 = vpop.permute.xlu0 %670
        %672 = vrot.lane.b32.xlu0 %v642, 2
        %v673 = vpop.permute.xlu0 %672
        %674 = vrot.lane.b32.xlu0 %v643, 2
        %v675 = vpop.permute.xlu0 %674
        %676 = vrot.lane.b32.xlu0 %v644, 2
        %v677 = vpop.permute.xlu0 %676
        %678 = vrot.lane.b32.xlu0 %v645, 2
        %v679 = vpop.permute.xlu0 %678
        %680 = vrot.lane.b32.xlu0 %v646, 2
        %v681 = vpop.permute.xlu0 %680
        %vm682 = vcmp.lt.s32.totalorder %v650, 2
        %v683 = vsel %vm682, %v679, %v681
        %v684 = vsel %vm682, %v677, %v679
        %v685 = vsel %vm682, %v675, %v677
        %v686 = vsel %vm682, %v673, %v675
        %v687 = vsel %vm682, %v671, %v673
        %v688 = vsel %vm682, %v669, %v671
        %v689 = vsel %vm682, %v667, %v669
        %v690 = vsel %vm682, %v681, %v667
        %v691 = vadd.s32 %v658, 4294967294
        %v692 = vadd.s32 %v659, 4294967294
        %v693 = vadd.s32 %v660, 4294967294
        %v694 = vadd.s32 %v661, 4294967294
        %v695 = vadd.s32 %v662, 4294967294
        %v696 = vadd.s32 %v663, 4294967294
        %v697 = vadd.s32 %v664, 4294967294
        %v698 = vadd.s32 %v665, 4294967294
        %vm699 = vcmp.ge.s32.totalorder %v691, 0
        %vm700 = vcmp.ge.s32.totalorder %v692, 0
        %vm701 = vcmp.ge.s32.totalorder %v693, 0
        %vm702 = vcmp.ge.s32.totalorder %v694, 0
        %vm703 = vcmp.ge.s32.totalorder %v695, 0
        %vm704 = vcmp.ge.s32.totalorder %v696, 0
        %vm705 = vcmp.ge.s32.totalorder %v697, 0
        %vm706 = vcmp.ge.s32.totalorder %v698, 0
        %vm707 = vcmp.lt.s32.totalorder %v691, 128
        %vm708 = vcmp.lt.s32.totalorder %v692, 128
        %vm709 = vcmp.lt.s32.totalorder %v693, 128
        %vm710 = vcmp.lt.s32.totalorder %v694, 128
        %vm711 = vcmp.lt.s32.totalorder %v695, 128
        %vm712 = vcmp.lt.s32.totalorder %v696, 128
        %vm713 = vcmp.lt.s32.totalorder %v697, 128
        %vm714 = vcmp.lt.s32.totalorder %v698, 128
        %vm715 = vmand %vm699, %vm707
        %vm716 = vmand %vm700, %vm708
        %vm717 = vmand %vm701, %vm709
        %vm718 = vmand %vm702, %vm710
        %vm719 = vmand %vm703, %vm711
        %vm720 = vmand %vm704, %vm712
        %vm721 = vmand %vm705, %vm713
        %vm722 = vmand %vm706, %vm714
        %v723 = vsel %vm715, 1, 0
        %v724 = vsel %vm716, 1, 0
        %v725 = vsel %vm717, 1, 0
        %v726 = vsel %vm718, 1, 0
        %v727 = vsel %vm719, 1, 0
        %v728 = vsel %vm720, 1, 0
        %v729 = vsel %vm721, 1, 0
        %v730 = vsel %vm722, 1, 0
        %v731 = vcvt.s32.f32 %v723
        %v732 = vcvt.s32.f32 %v724
        %v733 = vcvt.s32.f32 %v725
        %v734 = vcvt.s32.f32 %v726
        %v735 = vcvt.s32.f32 %v727
        %v736 = vcvt.s32.f32 %v728
        %v737 = vcvt.s32.f32 %v729
        %v738 = vcvt.s32.f32 %v730
        %v739 = vmul.f32 %v690, %v731
        %v740 = vmul.f32 %v689, %v732
        %v741 = vmul.f32 %v688, %v733
        %v742 = vmul.f32 %v687, %v734
        %v743 = vmul.f32 %v686, %v735
        %v744 = vmul.f32 %v685, %v736
        %v745 = vmul.f32 %v684, %v737
        %v746 = vmul.f32 %v683, %v738
        %748 = vset.pattern.permute.xlu0 0
        %749 = vperm.xlu0 %748, %v647
        %v750 = vpop.permute.xlu0 %749
        %v752 = vmul.f32 %v739, %v750
        %v753 = vmul.f32 %v740, %v750
        %v754 = vmul.f32 %v741, %v750
        %v755 = vmul.f32 %v742, %v750
        %v756 = vmul.f32 %v743, %v750
        %v757 = vmul.f32 %v744, %v750
        %v758 = vmul.f32 %v745, %v750
        %v759 = vmul.f32 %v746, %v750
        %761 = vset.pattern.permute.xlu0 0
        %762 = vperm.xlu0 %761, %v648
        %v763 = vpop.permute.xlu0 %762
        %v765 = vadd.f32 %v752, %v763
        %v766 = vadd.f32 %v753, %v763
        %v767 = vadd.f32 %v754, %v763
        %v768 = vadd.f32 %v755, %v763
        %v769 = vadd.f32 %v756, %v763
        %v770 = vadd.f32 %v757, %v763
        %v771 = vadd.f32 %v758, %v763
        %v772 = vadd.f32 %v759, %v763
        %773 = vrot.lane.b32.xlu0 %v639, 1
        %v774 = vpop.permute.xlu0 %773
        %775 = vrot.lane.b32.xlu0 %v640, 1
        %v776 = vpop.permute.xlu0 %775
        %777 = vrot.lane.b32.xlu0 %v641, 1
        %v778 = vpop.permute.xlu0 %777
        %779 = vrot.lane.b32.xlu0 %v642, 1
        %v780 = vpop.permute.xlu0 %779
        %781 = vrot.lane.b32.xlu0 %v643, 1
        %v782 = vpop.permute.xlu0 %781
        %783 = vrot.lane.b32.xlu0 %v644, 1
        %v784 = vpop.permute.xlu0 %783
        %785 = vrot.lane.b32.xlu0 %v645, 1
        %v786 = vpop.permute.xlu0 %785
        %787 = vrot.lane.b32.xlu0 %v646, 1
        %v788 = vpop.permute.xlu0 %787
        %vm789 = vcmp.lt.s32.totalorder %v650, 1
        %v790 = vsel %vm789, %v786, %v788
        %v791 = vsel %vm789, %v784, %v786
        %v792 = vsel %vm789, %v782, %v784
        %v793 = vsel %vm789, %v780, %v782
        %v794 = vsel %vm789, %v778, %v780
        %v795 = vsel %vm789, %v776, %v778
        %v796 = vsel %vm789, %v774, %v776
        %v797 = vsel %vm789, %v788, %v774
        %v798 = vadd.s32 %v658, 4294967295
        %v799 = vadd.s32 %v659, 4294967295
        %v800 = vadd.s32 %v660, 4294967295
        %v801 = vadd.s32 %v661, 4294967295
        %v802 = vadd.s32 %v662, 4294967295
        %v803 = vadd.s32 %v663, 4294967295
        %v804 = vadd.s32 %v664, 4294967295
        %v805 = vadd.s32 %v665, 4294967295
        %vm806 = vcmp.ge.s32.totalorder %v798, 0
        %vm807 = vcmp.ge.s32.totalorder %v799, 0
        %vm808 = vcmp.ge.s32.totalorder %v800, 0
        %vm809 = vcmp.ge.s32.totalorder %v801, 0
        %vm810 = vcmp.ge.s32.totalorder %v802, 0
        %vm811 = vcmp.ge.s32.totalorder %v803, 0
        %vm812 = vcmp.ge.s32.totalorder %v804, 0
        %vm813 = vcmp.ge.s32.totalorder %v805, 0
        %vm814 = vcmp.lt.s32.totalorder %v798, 128
        %vm815 = vcmp.lt.s32.totalorder %v799, 128
        %vm816 = vcmp.lt.s32.totalorder %v800, 128
        %vm817 = vcmp.lt.s32.totalorder %v801, 128
        %vm818 = vcmp.lt.s32.totalorder %v802, 128
        %vm819 = vcmp.lt.s32.totalorder %v803, 128
        %vm820 = vcmp.lt.s32.totalorder %v804, 128
        %vm821 = vcmp.lt.s32.totalorder %v805, 128
        %vm822 = vmand %vm806, %vm814
        %vm823 = vmand %vm807, %vm815
        %vm824 = vmand %vm808, %vm816
        %vm825 = vmand %vm809, %vm817
        %vm826 = vmand %vm810, %vm818
        %vm827 = vmand %vm811, %vm819
        %vm828 = vmand %vm812, %vm820
        %vm829 = vmand %vm813, %vm821
        %v830 = vsel %vm822, 1, 0
        %v831 = vsel %vm823, 1, 0
        %v832 = vsel %vm824, 1, 0
        %v833 = vsel %vm825, 1, 0
        %v834 = vsel %vm826, 1, 0
        %v835 = vsel %vm827, 1, 0
        %v836 = vsel %vm828, 1, 0
        %v837 = vsel %vm829, 1, 0
        %v838 = vcvt.s32.f32 %v830
        %v839 = vcvt.s32.f32 %v831
        %v840 = vcvt.s32.f32 %v832
        %v841 = vcvt.s32.f32 %v833
        %v842 = vcvt.s32.f32 %v834
        %v843 = vcvt.s32.f32 %v835
        %v844 = vcvt.s32.f32 %v836
        %v845 = vcvt.s32.f32 %v837
        %v846 = vmul.f32 %v797, %v838
        %v847 = vmul.f32 %v796, %v839
        %v848 = vmul.f32 %v795, %v840
        %v849 = vmul.f32 %v794, %v841
        %v850 = vmul.f32 %v793, %v842
        %v851 = vmul.f32 %v792, %v843
        %v852 = vmul.f32 %v791, %v844
        %v853 = vmul.f32 %v790, %v845
        %854 = vset.pattern.permute.xlu0 1
        %855 = vperm.xlu0 %854, %v647
        %v856 = vpop.permute.xlu0 %855
        %v858 = vmul.f32 %v846, %v856
        %v859 = vmul.f32 %v847, %v856
        %v860 = vmul.f32 %v848, %v856
        %v861 = vmul.f32 %v849, %v856
        %v862 = vmul.f32 %v850, %v856
        %v863 = vmul.f32 %v851, %v856
        %v864 = vmul.f32 %v852, %v856
        %v865 = vmul.f32 %v853, %v856
        %v866 = vadd.f32 %v765, %v858
        %v867 = vadd.f32 %v766, %v859
        %v868 = vadd.f32 %v767, %v860
        %v869 = vadd.f32 %v768, %v861
        %v870 = vadd.f32 %v769, %v862
        %v871 = vadd.f32 %v770, %v863
        %v872 = vadd.f32 %v771, %v864
        %v873 = vadd.f32 %v772, %v865
        %874 = vset.pattern.permute.xlu0 2
        %875 = vperm.xlu0 %874, %v647
        %v876 = vpop.permute.xlu0 %875
        %v878 = vmul.f32 %v639, %v876
        %v879 = vmul.f32 %v640, %v876
        %v880 = vmul.f32 %v641, %v876
        %v881 = vmul.f32 %v642, %v876
        %v882 = vmul.f32 %v643, %v876
        %v883 = vmul.f32 %v644, %v876
        %v884 = vmul.f32 %v645, %v876
        %v885 = vmul.f32 %v646, %v876
        %v886 = vadd.f32 %v866, %v878
        %v887 = vadd.f32 %v867, %v879
        %v888 = vadd.f32 %v868, %v880
        %v889 = vadd.f32 %v869, %v881
        %v890 = vadd.f32 %v870, %v882
        %v891 = vadd.f32 %v871, %v883
        %v892 = vadd.f32 %v872, %v884
        %v893 = vadd.f32 %v873, %v885
        %894 = vrot.lane.b32.xlu0 %v639, 127
        %v895 = vpop.permute.xlu0 %894
        %896 = vrot.lane.b32.xlu0 %v640, 127
        %v897 = vpop.permute.xlu0 %896
        %898 = vrot.lane.b32.xlu0 %v641, 127
        %v899 = vpop.permute.xlu0 %898
        %900 = vrot.lane.b32.xlu0 %v642, 127
        %v901 = vpop.permute.xlu0 %900
        %902 = vrot.lane.b32.xlu0 %v643, 127
        %v903 = vpop.permute.xlu0 %902
        %904 = vrot.lane.b32.xlu0 %v644, 127
        %v905 = vpop.permute.xlu0 %904
        %906 = vrot.lane.b32.xlu0 %v645, 127
        %v907 = vpop.permute.xlu0 %906
        %908 = vrot.lane.b32.xlu0 %v646, 127
        %v909 = vpop.permute.xlu0 %908
        %vm910 = vcmp.lt.s32.totalorder %v650, 127
        %v911 = vsel %vm910, %v907, %v909
        %v912 = vsel %vm910, %v905, %v907
        %v913 = vsel %vm910, %v903, %v905
        %v914 = vsel %vm910, %v901, %v903
        %v915 = vsel %vm910, %v899, %v901
        %v916 = vsel %vm910, %v897, %v899
        %v917 = vsel %vm910, %v895, %v897
        %v918 = vsel %vm910, %v909, %v895
        %v919 = vadd.s32 %v658, 1
        %v920 = vadd.s32 %v659, 1
        %v921 = vadd.s32 %v660, 1
        %v922 = vadd.s32 %v661, 1
        %v923 = vadd.s32 %v662, 1
        %v924 = vadd.s32 %v663, 1
        %v925 = vadd.s32 %v664, 1
        %v926 = vadd.s32 %v665, 1
        %vm927 = vcmp.ge.s32.totalorder %v919, 0
        %vm928 = vcmp.ge.s32.totalorder %v920, 0
        %vm929 = vcmp.ge.s32.totalorder %v921, 0
        %vm930 = vcmp.ge.s32.totalorder %v922, 0
        %vm931 = vcmp.ge.s32.totalorder %v923, 0
        %vm932 = vcmp.ge.s32.totalorder %v924, 0
        %vm933 = vcmp.ge.s32.totalorder %v925, 0
        %vm934 = vcmp.ge.s32.totalorder %v926, 0
        %vm935 = vcmp.lt.s32.totalorder %v919, 128
        %vm936 = vcmp.lt.s32.totalorder %v920, 128
        %vm937 = vcmp.lt.s32.totalorder %v921, 128
        %vm938 = vcmp.lt.s32.totalorder %v922, 128
        %vm939 = vcmp.lt.s32.totalorder %v923, 128
        %vm940 = vcmp.lt.s32.totalorder %v924, 128
        %vm941 = vcmp.lt.s32.totalorder %v925, 128
        %vm942 = vcmp.lt.s32.totalorder %v926, 128
        %vm943 = vmand %vm927, %vm935
        %vm944 = vmand %vm928, %vm936
        %vm945 = vmand %vm929, %vm937
        %vm946 = vmand %vm930, %vm938
        %vm947 = vmand %vm931, %vm939
        %vm948 = vmand %vm932, %vm940
        %vm949 = vmand %vm933, %vm941
        %vm950 = vmand %vm934, %vm942
        %v951 = vsel %vm943, 1, 0
        %v952 = vsel %vm944, 1, 0
        %v953 = vsel %vm945, 1, 0
        %v954 = vsel %vm946, 1, 0
        %v955 = vsel %vm947, 1, 0
        %v956 = vsel %vm948, 1, 0
        %v957 = vsel %vm949, 1, 0
        %v958 = vsel %vm950, 1, 0
        %v959 = vcvt.s32.f32 %v951
        %v960 = vcvt.s32.f32 %v952
        %v961 = vcvt.s32.f32 %v953
        %v962 = vcvt.s32.f32 %v954
        %v963 = vcvt.s32.f32 %v955
        %v964 = vcvt.s32.f32 %v956
        %v965 = vcvt.s32.f32 %v957
        %v966 = vcvt.s32.f32 %v958
        %v967 = vmul.f32 %v917, %v959
        %v968 = vmul.f32 %v916, %v960
        %v969 = vmul.f32 %v915, %v961
        %v970 = vmul.f32 %v914, %v962
        %v971 = vmul.f32 %v913, %v963
        %v972 = vmul.f32 %v912, %v964
        %v973 = vmul.f32 %v911, %v965
        %v974 = vmul.f32 %v918, %v966
        %975 = vset.pattern.permute.xlu0 3
        %976 = vperm.xlu0 %975, %v647
        %v977 = vpop.permute.xlu0 %976
        %v979 = vmul.f32 %v967, %v977
        %v980 = vmul.f32 %v968, %v977
        %v981 = vmul.f32 %v969, %v977
        %v982 = vmul.f32 %v970, %v977
        %v983 = vmul.f32 %v971, %v977
        %v984 = vmul.f32 %v972, %v977
        %v985 = vmul.f32 %v973, %v977
        %v986 = vmul.f32 %v974, %v977
        %v987 = vadd.f32 %v886, %v979
        %v988 = vadd.f32 %v887, %v980
        %v989 = vadd.f32 %v888, %v981
        %v990 = vadd.f32 %v889, %v982
        %v991 = vadd.f32 %v890, %v983
        %v992 = vadd.f32 %v891, %v984
        %v993 = vadd.f32 %v892, %v985
        %v994 = vadd.f32 %v893, %v986
        %995 = vrot.lane.b32.xlu0 %v639, 126
        %v996 = vpop.permute.xlu0 %995
        %997 = vrot.lane.b32.xlu0 %v640, 126
        %v998 = vpop.permute.xlu0 %997
        %999 = vrot.lane.b32.xlu0 %v641, 126
        %v1000 = vpop.permute.xlu0 %999
        %1001 = vrot.lane.b32.xlu0 %v642, 126
        %v1002 = vpop.permute.xlu0 %1001
        %1003 = vrot.lane.b32.xlu0 %v643, 126
        %v1004 = vpop.permute.xlu0 %1003
        %1005 = vrot.lane.b32.xlu0 %v644, 126
        %v1006 = vpop.permute.xlu0 %1005
        %1007 = vrot.lane.b32.xlu0 %v645, 126
        %v1008 = vpop.permute.xlu0 %1007
        %1009 = vrot.lane.b32.xlu0 %v646, 126
        %v1010 = vpop.permute.xlu0 %1009
        %vm1011 = vcmp.lt.s32.totalorder %v650, 126
        %v1012 = vsel %vm1011, %v1008, %v1010
        %v1013 = vsel %vm1011, %v1006, %v1008
        %v1014 = vsel %vm1011, %v1004, %v1006
        %v1015 = vsel %vm1011, %v1002, %v1004
        %v1016 = vsel %vm1011, %v1000, %v1002
        %v1017 = vsel %vm1011, %v998, %v1000
        %v1018 = vsel %vm1011, %v996, %v998
        %v1019 = vsel %vm1011, %v1010, %v996
        %v1020 = vadd.s32 %v658, 2
        %v1021 = vadd.s32 %v659, 2
        %v1022 = vadd.s32 %v660, 2
        %v1023 = vadd.s32 %v661, 2
        %v1024 = vadd.s32 %v662, 2
        %v1025 = vadd.s32 %v663, 2
        %v1026 = vadd.s32 %v664, 2
        %v1027 = vadd.s32 %v665, 2
        %vm1028 = vcmp.ge.s32.totalorder %v1020, 0
        %vm1029 = vcmp.ge.s32.totalorder %v1021, 0
        %vm1030 = vcmp.ge.s32.totalorder %v1022, 0
        %vm1031 = vcmp.ge.s32.totalorder %v1023, 0
        %vm1032 = vcmp.ge.s32.totalorder %v1024, 0
        %vm1033 = vcmp.ge.s32.totalorder %v1025, 0
        %vm1034 = vcmp.ge.s32.totalorder %v1026, 0
        %vm1035 = vcmp.ge.s32.totalorder %v1027, 0
        %vm1036 = vcmp.lt.s32.totalorder %v1020, 128
        %vm1037 = vcmp.lt.s32.totalorder %v1021, 128
        %vm1038 = vcmp.lt.s32.totalorder %v1022, 128
        %vm1039 = vcmp.lt.s32.totalorder %v1023, 128
        %vm1040 = vcmp.lt.s32.totalorder %v1024, 128
        %vm1041 = vcmp.lt.s32.totalorder %v1025, 128
        %vm1042 = vcmp.lt.s32.totalorder %v1026, 128
        %vm1043 = vcmp.lt.s32.totalorder %v1027, 128
        %vm1044 = vmand %vm1028, %vm1036
        %vm1045 = vmand %vm1029, %vm1037
        %vm1046 = vmand %vm1030, %vm1038
        %vm1047 = vmand %vm1031, %vm1039
        %vm1048 = vmand %vm1032, %vm1040
        %vm1049 = vmand %vm1033, %vm1041
        %vm1050 = vmand %vm1034, %vm1042
        %vm1051 = vmand %vm1035, %vm1043
        %v1052 = vsel %vm1044, 1, 0
        %v1053 = vsel %vm1045, 1, 0
        %v1054 = vsel %vm1046, 1, 0
        %v1055 = vsel %vm1047, 1, 0
        %v1056 = vsel %vm1048, 1, 0
        %v1057 = vsel %vm1049, 1, 0
        %v1058 = vsel %vm1050, 1, 0
        %v1059 = vsel %vm1051, 1, 0
        %v1060 = vcvt.s32.f32 %v1052
        %v1061 = vcvt.s32.f32 %v1053
        %v1062 = vcvt.s32.f32 %v1054
        %v1063 = vcvt.s32.f32 %v1055
        %v1064 = vcvt.s32.f32 %v1056
        %v1065 = vcvt.s32.f32 %v1057
        %v1066 = vcvt.s32.f32 %v1058
        %v1067 = vcvt.s32.f32 %v1059
        %v1068 = vmul.f32 %v1018, %v1060
        %v1069 = vmul.f32 %v1017, %v1061
        %v1070 = vmul.f32 %v1016, %v1062
        %v1071 = vmul.f32 %v1015, %v1063
        %v1072 = vmul.f32 %v1014, %v1064
        %v1073 = vmul.f32 %v1013, %v1065
        %v1074 = vmul.f32 %v1012, %v1066
        %v1075 = vmul.f32 %v1019, %v1067
        %1076 = vset.pattern.permute.xlu0 4
        %1077 = vperm.xlu0 %1076, %v647
        %v1078 = vpop.permute.xlu0 %1077
        %v1080 = vmul.f32 %v1068, %v1078
        %v1081 = vmul.f32 %v1069, %v1078
        %v1082 = vmul.f32 %v1070, %v1078
        %v1083 = vmul.f32 %v1071, %v1078
        %v1084 = vmul.f32 %v1072, %v1078
        %v1085 = vmul.f32 %v1073, %v1078
        %v1086 = vmul.f32 %v1074, %v1078
        %v1087 = vmul.f32 %v1075, %v1078
        %v1088 = vadd.f32 %v987, %v1080
        %v1089 = vadd.f32 %v988, %v1081
        %v1090 = vadd.f32 %v989, %v1082
        %v1091 = vadd.f32 %v990, %v1083
        %v1092 = vadd.f32 %v991, %v1084
        %v1093 = vadd.f32 %v992, %v1085
        %v1094 = vadd.f32 %v993, %v1086
        %v1095 = vadd.f32 %v994, %v1087
        %v1096 = vmax.f32 %v1088, 0.0
        %v1097 = vmax.f32 %v1089, 0.0
        %v1098 = vmax.f32 %v1090, 0.0
        %v1099 = vmax.f32 %v1091, 0.0
        %v1100 = vmax.f32 %v1092, 0.0
        %v1101 = vmax.f32 %v1093, 0.0
        %v1102 = vmax.f32 %v1094, 0.0
        %v1103 = vmax.f32 %v1095, 0.0
        %v1104 = vld [vmem:[%s5] sm:$0xf]
        %v1105 = vld [vmem:[%s6] sm:$0xf]
        %1107 = vset.pattern.permute.xlu0 0
        %1108 = vperm.xlu0 %1107, %v1105
        %v1109 = vpop.permute.xlu0 %1108
        %vm1111 = vcmask 64512
        %v1113 = vsel %vm1111, %v1104, 0
        %1115 = vmatprep.subr.mxu0 0.0
        %1116 = vmatpush1.msra.mxu0 0.0
        %1117 = vmatprep.subr.mxu0 0.0
        %1118 = vmatpush1.msra.mxu0 0.0
        %1119 = vmatprep.subr.mxu0 0.0
        %1120 = vmatpush1.msra.mxu0 0.0
        %1121 = vmatprep.subr.mxu0 0.0
        %1122 = vmatpush1.msra.mxu0 0.0
        %1123 = vmatprep.subr.mxu0 0.0
        %1124 = vmatpush1.msra.mxu0 0.0
        %1125 = vmatprep.subr.mxu0 0.0
        %1126 = vmatpush1.msra.mxu0 0.0
        %1127 = vmatprep.subr.mxu0 0.0
        %1128 = vmatpush1.msra.mxu0 0.0
        %1129 = vmatprep.subr.mxu0 0.0
        %1130 = vmatpush1.msra.mxu0 0.0
        %1131 = vmatprep.subr.mxu0 0.0
        %1132 = vmatpush1.msra.mxu0 0.0
        %1133 = vmatprep.subr.mxu0 0.0
        %1134 = vmatpush1.msra.mxu0 0.0
        %1135 = vmatprep.subr.mxu0 0.0
        %1136 = vmatpush1.msra.mxu0 0.0
        %1137 = vmatprep.subr.mxu0 0.0
        %1138 = vmatpush1.msra.mxu0 0.0
        %1139 = vmatprep.subr.mxu0 0.0
        %1140 = vmatpush1.msra.mxu0 0.0
        %1141 = vmatprep.subr.mxu0 0.0
        %1142 = vmatpush1.msra.mxu0 0.0
        %1143 = vmatprep.subr.mxu0 0.0
        %1144 = vmatpush1.msra.mxu0 0.0
        %1145 = vmatprep.subr.mxu0 %v1097
        %1146 = vmatpush1.msra.mxu0 %v1096
        %1147 = vmatprep.subr.mxu0 0.0
        %1148 = vmatpush2.msra.mxu0 0.0
        %1149 = vmatprep.subr.mxu0 0.0
        %1150 = vmatpush2.msra.mxu0 0.0
        %1151 = vmatprep.subr.mxu0 0.0
        %1152 = vmatpush2.msra.mxu0 0.0
        %1153 = vmatprep.subr.mxu0 0.0
        %1154 = vmatpush2.msra.mxu0 0.0
        %1155 = vmatprep.subr.mxu0 0.0
        %1156 = vmatpush2.msra.mxu0 0.0
        %1157 = vmatprep.subr.mxu0 0.0
        %1158 = vmatpush2.msra.mxu0 0.0
        %1159 = vmatprep.subr.mxu0 0.0
        %1160 = vmatpush2.msra.mxu0 0.0
        %1161 = vmatprep.subr.mxu0 0.0
        %1162 = vmatpush2.msra.mxu0 0.0
        %1163 = vmatprep.subr.mxu0 0.0
        %1164 = vmatpush2.msra.mxu0 0.0
        %1165 = vmatprep.subr.mxu0 0.0
        %1166 = vmatpush2.msra.mxu0 0.0
        %1167 = vmatprep.subr.mxu0 0.0
        %1168 = vmatpush2.msra.mxu0 0.0
        %1169 = vmatprep.subr.mxu0 0.0
        %1170 = vmatpush2.msra.mxu0 0.0
        %1171 = vmatprep.subr.mxu0 0.0
        %1172 = vmatpush2.msra.mxu0 0.0
        %1173 = vmatprep.subr.mxu0 0.0
        %1174 = vmatpush2.msra.mxu0 0.0
        %1175 = vmatprep.subr.mxu0 0.0
        %1176 = vmatpush2.msra.mxu0 0.0
        %1177 = vmatprep.subr.mxu0 0.0
        %1178 = vmatpush2.msra.mxu0 0.0
        %1179 = vmatprep.mubr.f32.mxu0 0.0
        %1180 = vmatmul.mubr.f32.gmra.mxu0 %v1113
        %v1181 = vpop.f32.mrf.mxu0
        %v1182 = vadd.f32 %v1109, %v1181
        %v1183 = vpop.f32.mrf.mxu0
        %v1184 = vadd.f32 %v1109, %v1183
        %1185 = vdwg.mxu0
        %1186 = vmatprep.subr.mxu0 0.0
        %1187 = vmatpush1.msra.mxu0 0.0
        %1188 = vmatprep.subr.mxu0 0.0
        %1189 = vmatpush1.msra.mxu0 0.0
        %1190 = vmatprep.subr.mxu0 0.0
        %1191 = vmatpush1.msra.mxu0 0.0
        %1192 = vmatprep.subr.mxu0 0.0
        %1193 = vmatpush1.msra.mxu0 0.0
        %1194 = vmatprep.subr.mxu0 0.0
        %1195 = vmatpush1.msra.mxu0 0.0
        %1196 = vmatprep.subr.mxu0 0.0
        %1197 = vmatpush1.msra.mxu0 0.0
        %1198 = vmatprep.subr.mxu0 0.0
        %1199 = vmatpush1.msra.mxu0 0.0
        %1200 = vmatprep.subr.mxu0 0.0
        %1201 = vmatpush1.msra.mxu0 0.0
        %1202 = vmatprep.subr.mxu0 0.0
        %1203 = vmatpush1.msra.mxu0 0.0
        %1204 = vmatprep.subr.mxu0 0.0
        %1205 = vmatpush1.msra.mxu0 0.0
        %1206 = vmatprep.subr.mxu0 0.0
        %1207 = vmatpush1.msra.mxu0 0.0
        %1208 = vmatprep.subr.mxu0 0.0
        %1209 = vmatpush1.msra.mxu0 0.0
        %1210 = vmatprep.subr.mxu0 0.0
        %1211 = vmatpush1.msra.mxu0 0.0
        %1212 = vmatprep.subr.mxu0 0.0
        %1213 = vmatpush1.msra.mxu0 0.0
        %1214 = vmatprep.subr.mxu0 0.0
        %1215 = vmatpush1.msra.mxu0 0.0
        %1216 = vmatprep.subr.mxu0 %v1099
        %1217 = vmatpush1.msra.mxu0 %v1098
        %1218 = vmatprep.subr.mxu0 0.0
        %1219 = vmatpush2.msra.mxu0 0.0
        %1220 = vmatprep.subr.mxu0 0.0
        %1221 = vmatpush2.msra.mxu0 0.0
        %1222 = vmatprep.subr.mxu0 0.0
        %1223 = vmatpush2.msra.mxu0 0.0
        %1224 = vmatprep.subr.mxu0 0.0
        %1225 = vmatpush2.msra.mxu0 0.0
        %1226 = vmatprep.subr.mxu0 0.0
        %1227 = vmatpush2.msra.mxu0 0.0
        %1228 = vmatprep.subr.mxu0 0.0
        %1229 = vmatpush2.msra.mxu0 0.0
        %1230 = vmatprep.subr.mxu0 0.0
        %1231 = vmatpush2.msra.mxu0 0.0
        %1232 = vmatprep.subr.mxu0 0.0
        %1233 = vmatpush2.msra.mxu0 0.0
        %1234 = vmatprep.subr.mxu0 0.0
        %1235 = vmatpush2.msra.mxu0 0.0
        %1236 = vmatprep.subr.mxu0 0.0
        %1237 = vmatpush2.msra.mxu0 0.0
        %1238 = vmatprep.subr.mxu0 0.0
        %1239 = vmatpush2.msra.mxu0 0.0
        %1240 = vmatprep.subr.mxu0 0.0
        %1241 = vmatpush2.msra.mxu0 0.0
        %1242 = vmatprep.subr.mxu0 0.0
        %1243 = vmatpush2.msra.mxu0 0.0
        %1244 = vmatprep.subr.mxu0 0.0
        %1245 = vmatpush2.msra.mxu0 0.0
        %1246 = vmatprep.subr.mxu0 0.0
        %1247 = vmatpush2.msra.mxu0 0.0
        %1248 = vmatprep.subr.mxu0 0.0
        %1249 = vmatpush2.msra.mxu0 0.0
        %1250 = vmatprep.mubr.f32.mxu0 0.0
        %1251 = vmatmul.mubr.f32.gmra.mxu0 %v1113
        %v1252 = vpop.f32.mrf.mxu0
        %v1253 = vadd.f32 %v1109, %v1252
        %v1254 = vpop.f32.mrf.mxu0
        %v1255 = vadd.f32 %v1109, %v1254
        %1256 = vdwg.mxu0
        %1257 = vmatprep.subr.mxu0 0.0
        %1258 = vmatpush1.msra.mxu0 0.0
        %1259 = vmatprep.subr.mxu0 0.0
        %1260 = vmatpush1.msra.mxu0 0.0
        %1261 = vmatprep.subr.mxu0 0.0
        %1262 = vmatpush1.msra.mxu0 0.0
        %1263 = vmatprep.subr.mxu0 0.0
        %1264 = vmatpush1.msra.mxu0 0.0
        %1265 = vmatprep.subr.mxu0 0.0
        %1266 = vmatpush1.msra.mxu0 0.0
        %1267 = vmatprep.subr.mxu0 0.0
        %1268 = vmatpush1.msra.mxu0 0.0
        %1269 = vmatprep.subr.mxu0 0.0
        %1270 = vmatpush1.msra.mxu0 0.0
        %1271 = vmatprep.subr.mxu0 0.0
        %1272 = vmatpush1.msra.mxu0 0.0
        %1273 = vmatprep.subr.mxu0 0.0
        %1274 = vmatpush1.msra.mxu0 0.0
        %1275 = vmatprep.subr.mxu0 0.0
        %1276 = vmatpush1.msra.mxu0 0.0
        %1277 = vmatprep.subr.mxu0 0.0
        %1278 = vmatpush1.msra.mxu0 0.0
        %1279 = vmatprep.subr.mxu0 0.0
        %1280 = vmatpush1.msra.mxu0 0.0
        %1281 = vmatprep.subr.mxu0 0.0
        %1282 = vmatpush1.msra.mxu0 0.0
        %1283 = vmatprep.subr.mxu0 0.0
        %1284 = vmatpush1.msra.mxu0 0.0
        %1285 = vmatprep.subr.mxu0 0.0
        %1286 = vmatpush1.msra.mxu0 0.0
        %1287 = vmatprep.subr.mxu0 %v1101
        %1288 = vmatpush1.msra.mxu0 %v1100
        %1289 = vmatprep.subr.mxu0 0.0
        %1290 = vmatpush2.msra.mxu0 0.0
        %1291 = vmatprep.subr.mxu0 0.0
        %1292 = vmatpush2.msra.mxu0 0.0
        %1293 = vmatprep.subr.mxu0 0.0
        %1294 = vmatpush2.msra.mxu0 0.0
        %1295 = vmatprep.subr.mxu0 0.0
        %1296 = vmatpush2.msra.mxu0 0.0
        %1297 = vmatprep.subr.mxu0 0.0
        %1298 = vmatpush2.msra.mxu0 0.0
        %1299 = vmatprep.subr.mxu0 0.0
        %1300 = vmatpush2.msra.mxu0 0.0
        %1301 = vmatprep.subr.mxu0 0.0
        %1302 = vmatpush2.msra.mxu0 0.0
        %1303 = vmatprep.subr.mxu0 0.0
        %1304 = vmatpush2.msra.mxu0 0.0
        %1305 = vmatprep.subr.mxu0 0.0
        %1306 = vmatpush2.msra.mxu0 0.0
        %1307 = vmatprep.subr.mxu0 0.0
        %1308 = vmatpush2.msra.mxu0 0.0
        %1309 = vmatprep.subr.mxu0 0.0
        %1310 = vmatpush2.msra.mxu0 0.0
        %1311 = vmatprep.subr.mxu0 0.0
        %1312 = vmatpush2.msra.mxu0 0.0
        %1313 = vmatprep.subr.mxu0 0.0
        %1314 = vmatpush2.msra.mxu0 0.0
        %1315 = vmatprep.subr.mxu0 0.0
        %1316 = vmatpush2.msra.mxu0 0.0
        %1317 = vmatprep.subr.mxu0 0.0
        %1318 = vmatpush2.msra.mxu0 0.0
        %1319 = vmatprep.subr.mxu0 0.0
        %1320 = vmatpush2.msra.mxu0 0.0
        %1321 = vmatprep.mubr.f32.mxu0 0.0
        %1322 = vmatmul.mubr.f32.gmra.mxu0 %v1113
        %v1323 = vpop.f32.mrf.mxu0
        %v1324 = vadd.f32 %v1109, %v1323
        %v1325 = vpop.f32.mrf.mxu0
        %v1326 = vadd.f32 %v1109, %v1325
        %1327 = vdwg.mxu0
        %1328 = vmatprep.subr.mxu0 0.0
        %1329 = vmatpush1.msra.mxu0 0.0
        %1330 = vmatprep.subr.mxu0 0.0
        %1331 = vmatpush1.msra.mxu0 0.0
        %1332 = vmatprep.subr.mxu0 0.0
        %1333 = vmatpush1.msra.mxu0 0.0
        %1334 = vmatprep.subr.mxu0 0.0
        %1335 = vmatpush1.msra.mxu0 0.0
        %1336 = vmatprep.subr.mxu0 0.0
        %1337 = vmatpush1.msra.mxu0 0.0
        %1338 = vmatprep.subr.mxu0 0.0
        %1339 = vmatpush1.msra.mxu0 0.0
        %1340 = vmatprep.subr.mxu0 0.0
        %1341 = vmatpush1.msra.mxu0 0.0
        %1342 = vmatprep.subr.mxu0 0.0
        %1343 = vmatpush1.msra.mxu0 0.0
        %1344 = vmatprep.subr.mxu0 0.0
        %1345 = vmatpush1.msra.mxu0 0.0
        %1346 = vmatprep.subr.mxu0 0.0
        %1347 = vmatpush1.msra.mxu0 0.0
        %1348 = vmatprep.subr.mxu0 0.0
        %1349 = vmatpush1.msra.mxu0 0.0
        %1350 = vmatprep.subr.mxu0 0.0
        %1351 = vmatpush1.msra.mxu0 0.0
        %1352 = vmatprep.subr.mxu0 0.0
        %1353 = vmatpush1.msra.mxu0 0.0
        %1354 = vmatprep.subr.mxu0 0.0
        %1355 = vmatpush1.msra.mxu0 0.0
        %1356 = vmatprep.subr.mxu0 0.0
        %1357 = vmatpush1.msra.mxu0 0.0
        %1358 = vmatprep.subr.mxu0 %v1103
        %1359 = vmatpush1.msra.mxu0 %v1102
        %1360 = vmatprep.subr.mxu0 0.0
        %1361 = vmatpush2.msra.mxu0 0.0
        %1362 = vmatprep.subr.mxu0 0.0
        %1363 = vmatpush2.msra.mxu0 0.0
        %1364 = vmatprep.subr.mxu0 0.0
        %1365 = vmatpush2.msra.mxu0 0.0
        %1366 = vmatprep.subr.mxu0 0.0
        %1367 = vmatpush2.msra.mxu0 0.0
        %1368 = vmatprep.subr.mxu0 0.0
        %1369 = vmatpush2.msra.mxu0 0.0
        %1370 = vmatprep.subr.mxu0 0.0
        %1371 = vmatpush2.msra.mxu0 0.0
        %1372 = vmatprep.subr.mxu0 0.0
        %1373 = vmatpush2.msra.mxu0 0.0
        %1374 = vmatprep.subr.mxu0 0.0
        %1375 = vmatpush2.msra.mxu0 0.0
        %1376 = vmatprep.subr.mxu0 0.0
        %1377 = vmatpush2.msra.mxu0 0.0
        %1378 = vmatprep.subr.mxu0 0.0
        %1379 = vmatpush2.msra.mxu0 0.0
        %1380 = vmatprep.subr.mxu0 0.0
        %1381 = vmatpush2.msra.mxu0 0.0
        %1382 = vmatprep.subr.mxu0 0.0
        %1383 = vmatpush2.msra.mxu0 0.0
        %1384 = vmatprep.subr.mxu0 0.0
        %1385 = vmatpush2.msra.mxu0 0.0
        %1386 = vmatprep.subr.mxu0 0.0
        %1387 = vmatpush2.msra.mxu0 0.0
        %1388 = vmatprep.subr.mxu0 0.0
        %1389 = vmatpush2.msra.mxu0 0.0
        %1390 = vmatprep.subr.mxu0 0.0
        %1391 = vmatpush2.msra.mxu0 0.0
        %1392 = vmatprep.mubr.f32.mxu0 0.0
        %1393 = vmatmul.mubr.f32.gmra.mxu0 %v1113
        %v1394 = vpop.f32.mrf.mxu0
        %v1395 = vadd.f32 %v1109, %v1394
        %v1396 = vpop.f32.mrf.mxu0
        %v1397 = vadd.f32 %v1109, %v1396
        %1398 = vdwg.mxu0
        %v1407 = vcombine.low %v1182, %v1184
        %v1408 = vcombine.low %v1253, %v1255
        %v1409 = vcombine.low %v1324, %v1326
        %v1410 = vcombine.low %v1395, %v1397
        %v1415 = vadd.f32 %v315, %v1407
        %v1416 = vadd.f32 %v316, %v1408
        %v1417 = vadd.f32 %v317, %v1409
        %v1418 = vadd.f32 %v318, %v1410
        %1419 = vst [vmem:[%s312] sm:$0xff] %v1415
        %1420 = vst [vmem:[%s312 + $0x8] sm:$0xff] %v1416
        %1421 = vst [vmem:[%s312 + $0x10] sm:$0xff] %v1417
        %1422 = vst [vmem:[%s312 + $0x18] sm:$0xff] %v1418
        %s1423 = sand.u32 %s200, 1
        %s1424 = scalar_lea.sflag [#allocation4], %s1423
        %s1425 = sand.u32 %s200, 1
        %s1426 = smul.addr %s1425, 32
        %s1427 = scalar_lea.vmem [#allocation5], %s1426
        // Predicated region
        $region53: #{tpu_custom_call.1} parent=47 // pred_check
          %p1428 = pneg %p210
        $region54: #{tpu_custom_call.1} parent=47 // pred_check_branch
          %1430 = sbr.rel (%p1428) target = $region56
        $region55: #{tpu_custom_call.1} parent=47 // pred_region
          %s1431 = smul.u32 8, %s29
          %s1433 = ssub.s32 512, 512
          %1434 = vsyncadd %s1424, %s1433
          %s1435 = smul.addr %s28, 8
          %s1436 = sadd.s32 %s1431, %s1435
          %s1437 = smul.addr %s1436, 64
          %s1438 = scalar_lea.hbm %s7, %s1437
          %s1440 = sshll.u32 %s1427, 4
          %s1441 = int_to_ptr.vmem [resolvable:$true] %s1440
          %1443 = dma.vmem_to_hbm [thread:$0]  %s1441, 512, %s1438, %s1424
        $region56: #{tpu_custom_call.1} parent=47 // pred_fallthru
          _
      $region48: #{tpu_custom_call.1} parent=5 // pred_fallthru
        _
      %p1444 = scmp.le.s32.totalorder 2, %s19
      // Predicated region
      $region57: #{tpu_custom_call.1} parent=5 // pred_check
        %p1445 = pneg %p1444
      $region58: #{tpu_custom_call.1} parent=5 // pred_check_branch
        %1447 = sbr.rel (%p1445) target = $region60
      $region59: #{tpu_custom_call.1} parent=5 // pred_region
        %s1448 = ssub.s32 %s19, 2
        // Predicated region
        $region61: #{tpu_custom_call.1} parent=59 // pred_check
          %p1449 = pneg %p216
        $region62: #{tpu_custom_call.1} parent=59 // pred_check_branch
          %1451 = sbr.rel (%p1449) target = $region64
        $region63: #{tpu_custom_call.1} parent=59 // pred_region
          %s1452 = sand.u32 %s201, 1
          %s1453 = scalar_lea.sflag [#allocation4], %s1452
          %s1454 = sand.u32 %s201, 1
          %s1455 = smul.addr %s1454, 32
          %s1456 = scalar_lea.vmem [#allocation5], %s1455
          %1457 = dma.done %s1453, 512
        $region64: #{tpu_custom_call.1} parent=59 // pred_fallthru
          _
      $region60: #{tpu_custom_call.1} parent=5 // pred_fallthru
        _
    $region6: #{tpu_custom_call.1} parent=1 // loop_footer
      %s23 = sadd.s32 1, %s19
    $region7: #{tpu_custom_call.1} parent=1 // loop_footer_branch
      %18 = sbr.rel target = $region3
    $region8: #{tpu_custom_call.1} parent=1 // loop_exit
      _
    %1458 = vsyncpa [#allocation3], 1
    %s1459 = scalar_lea.sflag [#allocation3], 1
    %1460 = vsyncpa %s1459, 1
    %1461 = vsyncpa [#allocation4], 1
    %s1462 = scalar_lea.sflag [#allocation4], 1
    %1463 = vsyncpa %s1462, 1

</llo_original>
